<compile_context>
chip_gen: v6e
topology: v6e:2x2x1
jax: 0.10.0
libtpu: 0.0.40
codegen_flags: <defaults>
</compile_context>

<pallas_src>
import jax
import jax.numpy as jnp
from jax.experimental import pallas as pl
from jax.experimental.pallas import tpu as pltpu

IN_FEATURES = 1050
K_PAD = 1152        # 9 * 128 — lane-aligned K for the first matmul
H1 = 512
H2 = 256
OUT_PAD = 128       # lane-dense padded output width (true output width is 1)


def _round_up(x, m):
    return (x + m - 1) // m * m


def _leaky_relu(x, slope=0.2):
    # Single VALU max instead of compare + select.
    return jnp.maximum(x, slope * x)


def discriminator_kernel(x_ref, w1_ref, b1_ref, w2_ref, b2_ref, w3_ref, b3_ref, o_ref):
    # x / weights are bf16 for the MXU; accumulate, bias-add and activate in f32.
    x = x_ref[...]                                                        # (TB, 1152) bf16
    h1 = jnp.dot(x, w1_ref[...], preferred_element_type=jnp.float32)     # (TB, 512) f32
    h1 = _leaky_relu(h1 + b1_ref[...])
    h2 = jnp.dot(h1.astype(jnp.bfloat16), w2_ref[...],
                 preferred_element_type=jnp.float32)                      # (TB, 256) f32
    h2 = _leaky_relu(h2 + b2_ref[...])
    out = jnp.dot(h2.astype(jnp.bfloat16), w3_ref[...],
                  preferred_element_type=jnp.float32)                     # (TB, 128) f32
    o_ref[...] = (out + b3_ref[...]).astype(o_ref.dtype)


def prepare_params(params):
    """One-time padding / casting of the f32 (in, out) params for the kernel."""
    w1 = jnp.pad(params["w1"], ((0, K_PAD - IN_FEATURES), (0, 0))).astype(jnp.bfloat16)
    w2 = params["w2"].astype(jnp.bfloat16)
    w3 = jnp.pad(params["w3"], ((0, 0), (0, OUT_PAD - 1))).astype(jnp.bfloat16)
    b1 = params["b1"].astype(jnp.float32)
    b2 = params["b2"].astype(jnp.float32)
    b3 = jnp.pad(params["b3"], ((0, 0), (0, OUT_PAD - 1))).astype(jnp.float32)
    return w1, b1, w2, b2, w3, b3


def discriminator_forward(latent, prepared, *, tb=None):
    """latent: (B, 1050) float32; prepared: output of prepare_params. Returns (B, 1) f32."""
    w1, b1, w2, b2, w3, b3 = prepared
    B = latent.shape[0]

    # Batch tile: 256 rows fills the v6e/v7x MXU; v5e is happy with <=128-row M tiles too.
    if tb is None:
        tb = 256 if B >= 256 else _round_up(max(B, 1), 8)
    B_pad = _round_up(B, tb)

    # Zero-pad activations: batch -> multiple of TB, K 1050 -> 1152 (exact, pads are zero).
    x = jnp.pad(latent.astype(jnp.bfloat16),
                ((0, B_pad - B), (0, K_PAD - IN_FEATURES)))

    grid = (B_pad // tb,)
    const = lambda i: (0, 0)   # weights / biases: VMEM-resident across all batch tiles

    weight_bytes = (w1.size + w2.size + w3.size) * 2 + (b1.size + b2.size + b3.size) * 4
    cost = pl.CostEstimate(
        flops=2 * B_pad * (K_PAD * H1 + H1 * H2 + H2 * OUT_PAD),
        transcendentals=0,
        bytes_accessed=weight_bytes + B_pad * (K_PAD * 2 + OUT_PAD * 4),
    )

    out = pl.pallas_call(
        discriminator_kernel,
        out_shape=jax.ShapeDtypeStruct((B_pad, OUT_PAD), jnp.float32),
        grid=grid,
        in_specs=[
            pl.BlockSpec((tb, K_PAD), lambda i: (i, 0)),   # x: tiled over batch
            pl.BlockSpec((K_PAD, H1), const),              # w1 (resident)
            pl.BlockSpec((1, H1), const),                  # b1
            pl.BlockSpec((H1, H2), const),                 # w2
            pl.BlockSpec((1, H2), const),                  # b2
            pl.BlockSpec((H2, OUT_PAD), const),            # w3 (lane-dense padded)
            pl.BlockSpec((1, OUT_PAD), const),             # b3
        ],
        out_specs=pl.BlockSpec((tb, OUT_PAD), lambda i: (i, 0)),
        compiler_params=pltpu.CompilerParams(dimension_semantics=("parallel",)),
        cost_estimate=cost,
    )(x, w1, b1, w2, b2, w3, b3)

    # Strip batch padding and the lane padding of the final projection.
    return out[:B, :1]


def init_params(key):
    """Deterministic synthetic parameters with the same shapes as the PyTorch module."""
    ks = jax.random.split(key, 6)

    def linear(kw, kb, fan_in, fan_out):
        bound = 1.0 / (fan_in ** 0.5)
        # Stored already transposed to (in, out); bias kept 2-D (1, out) for TPU layout.
        w = jax.random.uniform(kw, (fan_in, fan_out), jnp.float32, -bound, bound)
        b = jax.random.uniform(kb, (1, fan_out), jnp.float32, -bound, bound)
        return w, b

    w1, b1 = linear(ks[0], ks[1], IN_FEATURES, H1)
    w2, b2 = linear(ks[2], ks[3], H1, H2)
    w3, b3 = linear(ks[4], ks[5], H2, 1)
    return {"w1": w1, "b1": b1, "w2": w2, "b2": b2, "w3": w3, "b3": b3}


def reference_forward_f32(latent, p):
    h1 = _leaky_relu(latent @ p["w1"] + p["b1"])
    h2 = _leaky_relu(h1 @ p["w2"] + p["b2"])
    return h2 @ p["w3"] + p["b3"]


def reference_forward_bf16(latent, p):
    """Pure-JAX reference with the same bf16-matmul / f32-accumulate numerics as the kernel."""
    x = latent.astype(jnp.bfloat16)
    h1 = _leaky_relu(jnp.dot(x, p["w1"].astype(jnp.bfloat16),
                             preferred_element_type=jnp.float32) + p["b1"])
    h2 = _leaky_relu(jnp.dot(h1.astype(jnp.bfloat16), p["w2"].astype(jnp.bfloat16),
                             preferred_element_type=jnp.float32) + p["b2"])
    return jnp.dot(h2.astype(jnp.bfloat16), p["w3"].astype(jnp.bfloat16),
                   preferred_element_type=jnp.float32) + p["b3"]


if __name__ == "__main__":
    key = jax.random.PRNGKey(0)
    k_param, k_x = jax.random.split(key)

    params = init_params(k_param)
    prepared = prepare_params(params)
    latent = jax.random.normal(k_x, (8, 1050), jnp.float32)  # batch=8, in_features=1050

    out = discriminator_forward(latent, prepared)
    out = jax.block_until_ready(out)
    assert out.shape == (8, 1)

    # Tight check: identical bf16-matmul numerics.
    ref_bf16 = reference_forward_bf16(latent, params)
    assert jnp.allclose(out, ref_bf16, atol=1e-3, rtol=1e-3), "mismatch vs bf16 JAX reference"

    # Loose check: full-precision semantics of the original PyTorch module.
    ref_f32 = reference_forward_f32(latent, params)
    assert jnp.allclose(out, ref_f32, atol=5e-2, rtol=5e-2), "mismatch vs f32 JAX reference"

    print("KERNEL_OK")
</pallas_src>

<mosaic_0001>
module attributes {stable_mosaic.version = 11 : i64} {
  func.func @discriminator_kernel(%arg0: i32, %arg1: memref<8x1152xbf16, #tpu.memory_space<vmem>>, %arg2: memref<1152x512xbf16, #tpu.memory_space<vmem>>, %arg3: memref<1x512xf32, #tpu.memory_space<vmem>>, %arg4: memref<512x256xbf16, #tpu.memory_space<vmem>>, %arg5: memref<1x256xf32, #tpu.memory_space<vmem>>, %arg6: memref<256x128xbf16, #tpu.memory_space<vmem>>, %arg7: memref<1x128xf32, #tpu.memory_space<vmem>>, %arg8: memref<8x128xf32, #tpu.memory_space<vmem>>) attributes {dimension_semantics = [#tpu.dimension_semantics<parallel>], iteration_bounds = array<i64: 1>, scalar_prefetch = 0 : i64, scratch_operands = 0 : i64, tpu.core_type = #tpu.core_type<tc>, window_params = [{transform_indices = @transform_0, window_bounds = array<i64: 8, 1152>}, {pipeline_mode = #tpu.pipeline_mode<synchronous>, transform_indices = @transform_1, window_bounds = array<i64: 1152, 512>}, {pipeline_mode = #tpu.pipeline_mode<synchronous>, transform_indices = @transform_2, window_bounds = array<i64: 1, 512>}, {pipeline_mode = #tpu.pipeline_mode<synchronous>, transform_indices = @transform_3, window_bounds = array<i64: 512, 256>}, {pipeline_mode = #tpu.pipeline_mode<synchronous>, transform_indices = @transform_4, window_bounds = array<i64: 1, 256>}, {pipeline_mode = #tpu.pipeline_mode<synchronous>, transform_indices = @transform_5, window_bounds = array<i64: 256, 128>}, {pipeline_mode = #tpu.pipeline_mode<synchronous>, transform_indices = @transform_6, window_bounds = array<i64: 1, 128>}, {transform_indices = @transform_7, window_bounds = array<i64: 8, 128>}]} {
    %c0 = arith.constant 0 : index
    %c0_0 = arith.constant 0 : index
    %0 = vector.load %arg1[%c0, %c0_0] : memref<8x1152xbf16, #tpu.memory_space<vmem>>, vector<8x1152xbf16>
    %c0_1 = arith.constant 0 : index
    %c0_2 = arith.constant 0 : index
    %1 = vector.load %arg2[%c0_1, %c0_2] : memref<1152x512xbf16, #tpu.memory_space<vmem>>, vector<1152x512xbf16>
    %cst = arith.constant dense<0.000000e+00> : vector<8x512xf32>
    %2 = tpu.matmul %0, %1, %cst {dimension_numbers = #tpu.dot_dimension_numbers<[1], [0], [0], [1], [0, 0, 1, 1], [], []>} : vector<8x1152xbf16>, vector<1152x512xbf16>, vector<8x512xf32> -> vector<8x512xf32>
    %c0_3 = arith.constant 0 : index
    %c0_4 = arith.constant 0 : index
    %3 = vector.load %arg3[%c0_3, %c0_4] : memref<1x512xf32, #tpu.memory_space<vmem>>, vector<1x512xf32>
    %4 = vector.broadcast %3 : vector<1x512xf32> to vector<8x512xf32>
    %5 = arith.addf %2, %4 : vector<8x512xf32>
    %cst_5 = arith.constant 2.000000e-01 : f32
    %6 = vector.broadcast %cst_5 : f32 to vector<8x512xf32>
    %7 = arith.mulf %6, %5 : vector<8x512xf32>
    %8 = arith.maximumf %5, %7 : vector<8x512xf32>
    %9 = arith.truncf %8 : vector<8x512xf32> to vector<8x512xbf16>
    %c0_6 = arith.constant 0 : index
    %c0_7 = arith.constant 0 : index
    %10 = vector.load %arg4[%c0_6, %c0_7] : memref<512x256xbf16, #tpu.memory_space<vmem>>, vector<512x256xbf16>
    %cst_8 = arith.constant dense<0.000000e+00> : vector<8x256xf32>
    %11 = tpu.matmul %9, %10, %cst_8 {dimension_numbers = #tpu.dot_dimension_numbers<[1], [0], [0], [1], [0, 0, 1, 1], [], []>} : vector<8x512xbf16>, vector<512x256xbf16>, vector<8x256xf32> -> vector<8x256xf32>
    %c0_9 = arith.constant 0 : index
    %c0_10 = arith.constant 0 : index
    %12 = vector.load %arg5[%c0_9, %c0_10] : memref<1x256xf32, #tpu.memory_space<vmem>>, vector<1x256xf32>
    %13 = vector.broadcast %12 : vector<1x256xf32> to vector<8x256xf32>
    %14 = arith.addf %11, %13 : vector<8x256xf32>
    %cst_11 = arith.constant 2.000000e-01 : f32
    %15 = vector.broadcast %cst_11 : f32 to vector<8x256xf32>
    %16 = arith.mulf %15, %14 : vector<8x256xf32>
    %17 = arith.maximumf %14, %16 : vector<8x256xf32>
    %18 = arith.truncf %17 : vector<8x256xf32> to vector<8x256xbf16>
    %c0_12 = arith.constant 0 : index
    %c0_13 = arith.constant 0 : index
    %19 = vector.load %arg6[%c0_12, %c0_13] : memref<256x128xbf16, #tpu.memory_space<vmem>>, vector<256x128xbf16>
    %cst_14 = arith.constant dense<0.000000e+00> : vector<8x128xf32>
    %20 = tpu.matmul %18, %19, %cst_14 {dimension_numbers = #tpu.dot_dimension_numbers<[1], [0], [0], [1], [0, 0, 1, 1], [], []>} : vector<8x256xbf16>, vector<256x128xbf16>, vector<8x128xf32> -> vector<8x128xf32>
    %c0_15 = arith.constant 0 : index
    %c0_16 = arith.constant 0 : index
    %21 = vector.load %arg7[%c0_15, %c0_16] : memref<1x128xf32, #tpu.memory_space<vmem>>, vector<1x128xf32>
    %22 = vector.broadcast %21 : vector<1x128xf32> to vector<8x128xf32>
    %23 = arith.addf %20, %22 : vector<8x128xf32>
    %c0_17 = arith.constant 0 : index
    %c0_18 = arith.constant 0 : index
    %24 = vector.load %arg8[%c0_17, %c0_18] : memref<8x128xf32, #tpu.memory_space<vmem>>, vector<8x128xf32>
    tpu.vector_store %arg8[%c0_17, %c0_18], %23 {strides = array<i32>} : memref<8x128xf32, #tpu.memory_space<vmem>>, vector<8x128xf32>,
    return
  }
  func.func @transform_0(%arg0: i32) -> (i32, i32) {
    %c0_i32 = arith.constant 0 : i32
    %c0_i32_0 = arith.constant 0 : i32
    return %arg0, %c0_i32 : i32, i32
  }
  func.func @transform_1(%arg0: i32) -> (i32, i32) {
    %c0_i32 = arith.constant 0 : i32
    %c0_i32_0 = arith.constant 0 : i32
    %c0_i32_1 = arith.constant 0 : i32
    return %c0_i32, %c0_i32_0 : i32, i32
  }
  func.func @transform_2(%arg0: i32) -> (i32, i32) {
    %c0_i32 = arith.constant 0 : i32
    %c0_i32_0 = arith.constant 0 : i32
    %c0_i32_1 = arith.constant 0 : i32
    return %c0_i32, %c0_i32_0 : i32, i32
  }
  func.func @transform_3(%arg0: i32) -> (i32, i32) {
    %c0_i32 = arith.constant 0 : i32
    %c0_i32_0 = arith.constant 0 : i32
    %c0_i32_1 = arith.constant 0 : i32
    return %c0_i32, %c0_i32_0 : i32, i32
  }
  func.func @transform_4(%arg0: i32) -> (i32, i32) {
    %c0_i32 = arith.constant 0 : i32
    %c0_i32_0 = arith.constant 0 : i32
    %c0_i32_1 = arith.constant 0 : i32
    return %c0_i32, %c0_i32_0 : i32, i32
  }
  func.func @transform_5(%arg0: i32) -> (i32, i32) {
    %c0_i32 = arith.constant 0 : i32
    %c0_i32_0 = arith.constant 0 : i32
    %c0_i32_1 = arith.constant 0 : i32
    return %c0_i32, %c0_i32_0 : i32, i32
  }
  func.func @transform_6(%arg0: i32) -> (i32, i32) {
    %c0_i32 = arith.constant 0 : i32
    %c0_i32_0 = arith.constant 0 : i32
    %c0_i32_1 = arith.constant 0 : i32
    return %c0_i32, %c0_i32_0 : i32, i32
  }
  func.func @transform_7(%arg0: i32) -> (i32, i32) {
    %c0_i32 = arith.constant 0 : i32
    %c0_i32_0 = arith.constant 0 : i32
    return %arg0, %c0_i32 : i32, i32
  }
}

</mosaic_0001>

<llo_original>
// kernel: tpu_custom_call.1
$region0: #{tpu_custom_call.1}
  #allocation0 [shape = 'u32[]', space=smem, size = 0x4, offset = 0x4, fixed_abs, tag = 'smem constant byte address 0x4 - core index']
  #allocation1 [shape = 'u32[144,128]{1,0:T(1,128)}', space=vmem, size = 0x12000, scoped, tag = 'internal scratch']
  %s0 = inlined_call_operand.hbm [shape: bf16[8,1152], index: 0, kind: input, shape index: {}]
  %s1 = inlined_call_operand.hbm [shape: bf16[1152,512], index: 1, kind: input, shape index: {}]
  %s2 = inlined_call_operand.hbm [shape: f32[1,512], index: 2, kind: input, shape index: {}]
  %s3 = inlined_call_operand.hbm [shape: bf16[512,256], index: 3, kind: input, shape index: {}]
  %s4 = inlined_call_operand.hbm [shape: f32[1,256], index: 4, kind: input, shape index: {}]
  %s5 = inlined_call_operand.hbm [shape: bf16[256,128], index: 5, kind: input, shape index: {}]
  %s6 = inlined_call_operand.hbm [shape: f32[1,128], index: 6, kind: input, shape index: {}]
  %s7 = inlined_call_operand.hbm [shape: f32[8,128], index: 7, kind: output, shape index: {}]
  %s8 = sld [smem:[#allocation0]]
  $region66: #{tpu_custom_call.1} parent=0
    _
  %s10 = ssub.s32 1, %s8
  %s11 = scalar_select 0, %s10, %s8
  $region1: #{tpu_custom_call.1} parent=0
    #allocation2 [shape = 'u8[18432]{0}', space=vmem, size = 0x4800, scoped, tag = 'input window, operand 0, single buffered']
    #allocation3 [shape = 's32[1]{0}', space=sflag, size = 0x4, scoped, tag = 'scoped memory for tpu_custom_call.1']
    #allocation4 [shape = 's32[1]{0}', space=sflag, size = 0x4, scoped, tag = 'scoped memory for tpu_custom_call.1']
    #allocation5 [shape = 'u8[1179648]{0}', space=vmem, size = 0x120000, scoped, tag = 'input window, operand 1, single buffered']
    #allocation6 [shape = 's32[1]{0}', space=sflag, size = 0x4, scoped, tag = 'scoped memory for tpu_custom_call.1']
    #allocation7 [shape = 'u8[2048]{0}', space=vmem, size = 0x800, scoped, tag = 'input window, operand 2, single buffered']
    #allocation8 [shape = 'u8[262144]{0}', space=vmem, size = 0x40000, scoped, tag = 'input window, operand 3, single buffered']
    #allocation9 [shape = 's32[1]{0}', space=sflag, size = 0x4, scoped, tag = 'scoped memory for tpu_custom_call.1']
    #allocation10 [shape = 'u8[1024]{0}', space=vmem, size = 0x400, scoped, tag = 'input window, operand 4, single buffered']
    #allocation11 [shape = 'u8[65536]{0}', space=vmem, size = 0x10000, scoped, tag = 'input window, operand 5, single buffered']
    #allocation12 [shape = 's32[1]{0}', space=sflag, size = 0x4, scoped, tag = 'scoped memory for tpu_custom_call.1']
    #allocation13 [shape = 'u8[512]{0}', space=vmem, size = 0x400, scoped, tag = 'input window, operand 6, single buffered']
    #allocation14 [shape = 'u8[4096]{0}', space=vmem, size = 0x1000, scoped, tag = 'output window, operand 0, single buffered']
    %12 = vsyncpa [#allocation3], 0
    %13 = vsyncpa [#allocation6], 0
    %14 = vsyncpa [#allocation9], 0
    %15 = vsyncpa [#allocation12], 0
    %16 = vsyncpa [#allocation4], 0
    // Predicated region
    $region2: #{tpu_custom_call.1} parent=1 // pred_check
      _
    $region3: #{tpu_custom_call.1} parent=1 // pred_check_branch
      %18 = sbr.rel (0) target = $region5
    $region4: #{tpu_custom_call.1} parent=1 // pred_region
      %s20 = ssub.s32 576, 576
      %21 = vsyncadd [#allocation3], %s20
      %s23 = sshll.u32 [#allocation2], 4
      %s24 = int_to_ptr.vmem [resolvable:$true] %s23
      %26 = dma.hbm_to_vmem [thread:$0]  %s0, 576, %s24, [#allocation3]
    $region5: #{tpu_custom_call.1} parent=1 // pred_fallthru
      _
    // Predicated region
    $region6: #{tpu_custom_call.1} parent=1 // pred_check
      _
    $region7: #{tpu_custom_call.1} parent=1 // pred_check_branch
      %28 = sbr.rel (0) target = $region9
    $region8: #{tpu_custom_call.1} parent=1 // pred_region
      %s30 = ssub.s32 36864, 36864
      %31 = vsyncadd [#allocation6], %s30
      %s32 = sshll.u32 [#allocation5], 4
      %s33 = int_to_ptr.vmem [resolvable:$true] %s32
      %38 = dma.hbm_to_vmem [thread:$0]  %s1, 36864, %s33, [#allocation6], 256, 256, 16
    $region9: #{tpu_custom_call.1} parent=1 // pred_fallthru
      _
    // Predicated region
    $region10: #{tpu_custom_call.1} parent=1 // pred_check
      _
    $region11: #{tpu_custom_call.1} parent=1 // pred_check_branch
      %40 = sbr.rel (0) target = $region13
    $region12: #{tpu_custom_call.1} parent=1 // pred_region
      %s42 = ssub.s32 64, 64
      %43 = vsyncadd [#allocation6], %s42
      %s45 = sshll.u32 [#allocation7], 4
      %s46 = int_to_ptr.vmem [resolvable:$true] %s45
      %48 = dma.hbm_to_vmem [thread:$0]  %s2, 64, %s46, [#allocation6]
    $region13: #{tpu_custom_call.1} parent=1 // pred_fallthru
      _
    // Predicated region
    $region14: #{tpu_custom_call.1} parent=1 // pred_check
      _
    $region15: #{tpu_custom_call.1} parent=1 // pred_check_branch
      %50 = sbr.rel (0) target = $region17
    $region16: #{tpu_custom_call.1} parent=1 // pred_region
      %s52 = ssub.s32 8192, 8192
      %53 = vsyncadd [#allocation9], %s52
      %s54 = sshll.u32 [#allocation8], 4
      %s55 = int_to_ptr.vmem [resolvable:$true] %s54
      %60 = dma.hbm_to_vmem [thread:$0]  %s3, 8192, %s55, [#allocation9], 128, 128, 8
    $region17: #{tpu_custom_call.1} parent=1 // pred_fallthru
      _
    // Predicated region
    $region18: #{tpu_custom_call.1} parent=1 // pred_check
      _
    $region19: #{tpu_custom_call.1} parent=1 // pred_check_branch
      %62 = sbr.rel (0) target = $region21
    $region20: #{tpu_custom_call.1} parent=1 // pred_region
      %s64 = ssub.s32 32, 32
      %65 = vsyncadd [#allocation9], %s64
      %s67 = sshll.u32 [#allocation10], 4
      %s68 = int_to_ptr.vmem [resolvable:$true] %s67
      %70 = dma.hbm_to_vmem [thread:$0]  %s4, 32, %s68, [#allocation9]
    $region21: #{tpu_custom_call.1} parent=1 // pred_fallthru
      _
    // Predicated region
    $region22: #{tpu_custom_call.1} parent=1 // pred_check
      _
    $region23: #{tpu_custom_call.1} parent=1 // pred_check_branch
      %72 = sbr.rel (0) target = $region25
    $region24: #{tpu_custom_call.1} parent=1 // pred_region
      %s74 = ssub.s32 2048, 2048
      %75 = vsyncadd [#allocation12], %s74
      %s76 = sshll.u32 [#allocation11], 4
      %s77 = int_to_ptr.vmem [resolvable:$true] %s76
      %82 = dma.hbm_to_vmem [thread:$0]  %s5, 2048, %s77, [#allocation12], 64, 64, 4
    $region25: #{tpu_custom_call.1} parent=1 // pred_fallthru
      _
    // Predicated region
    $region26: #{tpu_custom_call.1} parent=1 // pred_check
      _
    $region27: #{tpu_custom_call.1} parent=1 // pred_check_branch
      %84 = sbr.rel (0) target = $region29
    $region28: #{tpu_custom_call.1} parent=1 // pred_region
      %s86 = ssub.s32 16, 16
      %87 = vsyncadd [#allocation12], %s86
      %s89 = sshll.u32 [#allocation13], 4
      %s90 = int_to_ptr.vmem [resolvable:$true] %s89
      %92 = dma.hbm_to_vmem [thread:$0]  %s6, 16, %s90, [#allocation12]
    $region29: #{tpu_custom_call.1} parent=1 // pred_fallthru
      _
    // Predicated region
    $region30: #{tpu_custom_call.1} parent=1 // pred_check
      _
    $region31: #{tpu_custom_call.1} parent=1 // pred_check_branch
      %94 = sbr.rel (0) target = $region33
    $region32: #{tpu_custom_call.1} parent=1 // pred_region
      %95 = dma.done [#allocation3], 576
    $region33: #{tpu_custom_call.1} parent=1 // pred_fallthru
      _
    // Predicated region
    $region34: #{tpu_custom_call.1} parent=1 // pred_check
      _
    $region35: #{tpu_custom_call.1} parent=1 // pred_check_branch
      %97 = sbr.rel (0) target = $region37
    $region36: #{tpu_custom_call.1} parent=1 // pred_region
      %98 = dma.done [#allocation6], 36864
    $region37: #{tpu_custom_call.1} parent=1 // pred_fallthru
      _
    // Predicated region
    $region38: #{tpu_custom_call.1} parent=1 // pred_check
      _
    $region39: #{tpu_custom_call.1} parent=1 // pred_check_branch
      %100 = sbr.rel (0) target = $region41
    $region40: #{tpu_custom_call.1} parent=1 // pred_region
      %101 = dma.done [#allocation6], 64
    $region41: #{tpu_custom_call.1} parent=1 // pred_fallthru
      _
    // Predicated region
    $region42: #{tpu_custom_call.1} parent=1 // pred_check
      _
    $region43: #{tpu_custom_call.1} parent=1 // pred_check_branch
      %103 = sbr.rel (0) target = $region45
    $region44: #{tpu_custom_call.1} parent=1 // pred_region
      %104 = dma.done [#allocation9], 8192
    $region45: #{tpu_custom_call.1} parent=1 // pred_fallthru
      _
    // Predicated region
    $region46: #{tpu_custom_call.1} parent=1 // pred_check
      _
    $region47: #{tpu_custom_call.1} parent=1 // pred_check_branch
      %106 = sbr.rel (0) target = $region49
    $region48: #{tpu_custom_call.1} parent=1 // pred_region
      %107 = dma.done [#allocation9], 32
    $region49: #{tpu_custom_call.1} parent=1 // pred_fallthru
      _
    // Predicated region
    $region50: #{tpu_custom_call.1} parent=1 // pred_check
      _
    $region51: #{tpu_custom_call.1} parent=1 // pred_check_branch
      %109 = sbr.rel (0) target = $region53
    $region52: #{tpu_custom_call.1} parent=1 // pred_region
      %110 = dma.done [#allocation12], 2048
    $region53: #{tpu_custom_call.1} parent=1 // pred_fallthru
      _
    // Predicated region
    $region54: #{tpu_custom_call.1} parent=1 // pred_check
      _
    $region55: #{tpu_custom_call.1} parent=1 // pred_check_branch
      %112 = sbr.rel (0) target = $region57
    $region56: #{tpu_custom_call.1} parent=1 // pred_region
      %113 = dma.done [#allocation12], 16
    $region57: #{tpu_custom_call.1} parent=1 // pred_fallthru
      _
    %v115 = vld [vmem:[#allocation2] sm:$0xff]
    %v116 = vld [vmem:[#allocation2 + $0x8] sm:$0xff]
    %v117 = vld [vmem:[#allocation2 + $0x10] sm:$0xff]
    %v118 = vld [vmem:[#allocation2 + $0x18] sm:$0xff]
    %v119 = vld [vmem:[#allocation2 + $0x20] sm:$0xf]
    %v120 = vld [vmem:[#allocation5] sm:$0xff]
    %v121 = vld [vmem:[#allocation5 + $0x8] sm:$0xff]
    %v122 = vld [vmem:[#allocation5 + $0x10] sm:$0xff]
    %v123 = vld [vmem:[#allocation5 + $0x18] sm:$0xff]
    %v124 = vld [vmem:[#allocation5 + $0x20] sm:$0xff]
    %v125 = vld [vmem:[#allocation5 + $0x28] sm:$0xff]
    %v126 = vld [vmem:[#allocation5 + $0x30] sm:$0xff]
    %v127 = vld [vmem:[#allocation5 + $0x38] sm:$0xff]
    %v128 = vld [vmem:[#allocation5 + $0x40] sm:$0xff]
    %v129 = vld [vmem:[#allocation5 + $0x48] sm:$0xff]
    %v130 = vld [vmem:[#allocation5 + $0x50] sm:$0xff]
    %v131 = vld [vmem:[#allocation5 + $0x58] sm:$0xff]
    %v132 = vld [vmem:[#allocation5 + $0x60] sm:$0xff]
    %v133 = vld [vmem:[#allocation5 + $0x68] sm:$0xff]
    %v134 = vld [vmem:[#allocation5 + $0x70] sm:$0xff]
    %v135 = vld [vmem:[#allocation5 + $0x78] sm:$0xff]
    %v136 = vld [vmem:[#allocation5 + $0x80] sm:$0xff]
    %v137 = vld [vmem:[#allocation5 + $0x88] sm:$0xff]
    %v138 = vld [vmem:[#allocation5 + $0x90] sm:$0xff]
    %v139 = vld [vmem:[#allocation5 + $0x98] sm:$0xff]
    %v140 = vld [vmem:[#allocation5 + $0xa0] sm:$0xff]
    %v141 = vld [vmem:[#allocation5 + $0xa8] sm:$0xff]
    %v142 = vld [vmem:[#allocation5 + $0xb0] sm:$0xff]
    %v143 = vld [vmem:[#allocation5 + $0xb8] sm:$0xff]
    %v144 = vld [vmem:[#allocation5 + $0xc0] sm:$0xff]
    %v145 = vld [vmem:[#allocation5 + $0xc8] sm:$0xff]
    %v146 = vld [vmem:[#allocation5 + $0xd0] sm:$0xff]
    %v147 = vld [vmem:[#allocation5 + $0xd8] sm:$0xff]
    %v148 = vld [vmem:[#allocation5 + $0xe0] sm:$0xff]
    %v149 = vld [vmem:[#allocation5 + $0xe8] sm:$0xff]
    %v150 = vld [vmem:[#allocation5 + $0xf0] sm:$0xff]
    %v151 = vld [vmem:[#allocation5 + $0xf8] sm:$0xff]
    %v152 = vld [vmem:[#allocation5 + $0x100] sm:$0xff]
    %v153 = vld [vmem:[#allocation5 + $0x108] sm:$0xff]
    %v154 = vld [vmem:[#allocation5 + $0x110] sm:$0xff]
    %v155 = vld [vmem:[#allocation5 + $0x118] sm:$0xff]
    %v156 = vld [vmem:[#allocation5 + $0x120] sm:$0xff]
    %v157 = vld [vmem:[#allocation5 + $0x128] sm:$0xff]
    %v158 = vld [vmem:[#allocation5 + $0x130] sm:$0xff]
    %v159 = vld [vmem:[#allocation5 + $0x138] sm:$0xff]
    %v160 = vld [vmem:[#allocation5 + $0x140] sm:$0xff]
    %v161 = vld [vmem:[#allocation5 + $0x148] sm:$0xff]
    %v162 = vld [vmem:[#allocation5 + $0x150] sm:$0xff]
    %v163 = vld [vmem:[#allocation5 + $0x158] sm:$0xff]
    %v164 = vld [vmem:[#allocation5 + $0x160] sm:$0xff]
    %v165 = vld [vmem:[#allocation5 + $0x168] sm:$0xff]
    %v166 = vld [vmem:[#allocation5 + $0x170] sm:$0xff]
    %v167 = vld [vmem:[#allocation5 + $0x178] sm:$0xff]
    %v168 = vld [vmem:[#allocation5 + $0x180] sm:$0xff]
    %v169 = vld [vmem:[#allocation5 + $0x188] sm:$0xff]
    %v170 = vld [vmem:[#allocation5 + $0x190] sm:$0xff]
    %v171 = vld [vmem:[#allocation5 + $0x198] sm:$0xff]
    %v172 = vld [vmem:[#allocation5 + $0x1a0] sm:$0xff]
    %v173 = vld [vmem:[#allocation5 + $0x1a8] sm:$0xff]
    %v174 = vld [vmem:[#allocation5 + $0x1b0] sm:$0xff]
    %v175 = vld [vmem:[#allocation5 + $0x1b8] sm:$0xff]
    %v176 = vld [vmem:[#allocation5 + $0x1c0] sm:$0xff]
    %v177 = vld [vmem:[#allocation5 + $0x1c8] sm:$0xff]
    %v178 = vld [vmem:[#allocation5 + $0x1d0] sm:$0xff]
    %v179 = vld [vmem:[#allocation5 + $0x1d8] sm:$0xff]
    %v180 = vld [vmem:[#allocation5 + $0x1e0] sm:$0xff]
    %v181 = vld [vmem:[#allocation5 + $0x1e8] sm:$0xff]
    %v182 = vld [vmem:[#allocation5 + $0x1f0] sm:$0xff]
    %v183 = vld [vmem:[#allocation5 + $0x1f8] sm:$0xff]
    %v184 = vld [vmem:[#allocation5 + $0x200] sm:$0xff]
    %v185 = vld [vmem:[#allocation5 + $0x208] sm:$0xff]
    %v186 = vld [vmem:[#allocation5 + $0x210] sm:$0xff]
    %v187 = vld [vmem:[#allocation5 + $0x218] sm:$0xff]
    %v188 = vld [vmem:[#allocation5 + $0x220] sm:$0xff]
    %v189 = vld [vmem:[#allocation5 + $0x228] sm:$0xff]
    %v190 = vld [vmem:[#allocation5 + $0x230] sm:$0xff]
    %v191 = vld [vmem:[#allocation5 + $0x238] sm:$0xff]
    %v192 = vld [vmem:[#allocation5 + $0x240] sm:$0xff]
    %v193 = vld [vmem:[#allocation5 + $0x248] sm:$0xff]
    %v194 = vld [vmem:[#allocation5 + $0x250] sm:$0xff]
    %v195 = vld [vmem:[#allocation5 + $0x258] sm:$0xff]
    %v196 = vld [vmem:[#allocation5 + $0x260] sm:$0xff]
    %v197 = vld [vmem:[#allocation5 + $0x268] sm:$0xff]
    %v198 = vld [vmem:[#allocation5 + $0x270] sm:$0xff]
    %v199 = vld [vmem:[#allocation5 + $0x278] sm:$0xff]
    %v200 = vld [vmem:[#allocation5 + $0x280] sm:$0xff]
    %v201 = vld [vmem:[#allocation5 + $0x288] sm:$0xff]
    %v202 = vld [vmem:[#allocation5 + $0x290] sm:$0xff]
    %v203 = vld [vmem:[#allocation5 + $0x298] sm:$0xff]
    %v204 = vld [vmem:[#allocation5 + $0x2a0] sm:$0xff]
    %v205 = vld [vmem:[#allocation5 + $0x2a8] sm:$0xff]
    %v206 = vld [vmem:[#allocation5 + $0x2b0] sm:$0xff]
    %v207 = vld [vmem:[#allocation5 + $0x2b8] sm:$0xff]
    %v208 = vld [vmem:[#allocation5 + $0x2c0] sm:$0xff]
    %v209 = vld [vmem:[#allocation5 + $0x2c8] sm:$0xff]
    %v210 = vld [vmem:[#allocation5 + $0x2d0] sm:$0xff]
    %v211 = vld [vmem:[#allocation5 + $0x2d8] sm:$0xff]
    %v212 = vld [vmem:[#allocation5 + $0x2e0] sm:$0xff]
    %v213 = vld [vmem:[#allocation5 + $0x2e8] sm:$0xff]
    %v214 = vld [vmem:[#allocation5 + $0x2f0] sm:$0xff]
    %v215 = vld [vmem:[#allocation5 + $0x2f8] sm:$0xff]
    %v216 = vld [vmem:[#allocation5 + $0x300] sm:$0xff]
    %v217 = vld [vmem:[#allocation5 + $0x308] sm:$0xff]
    %v218 = vld [vmem:[#allocation5 + $0x310] sm:$0xff]
    %v219 = vld [vmem:[#allocation5 + $0x318] sm:$0xff]
    %v220 = vld [vmem:[#allocation5 + $0x320] sm:$0xff]
    %v221 = vld [vmem:[#allocation5 + $0x328] sm:$0xff]
    %v222 = vld [vmem:[#allocation5 + $0x330] sm:$0xff]
    %v223 = vld [vmem:[#allocation5 + $0x338] sm:$0xff]
    %v224 = vld [vmem:[#allocation5 + $0x340] sm:$0xff]
    %v225 = vld [vmem:[#allocation5 + $0x348] sm:$0xff]
    %v226 = vld [vmem:[#allocation5 + $0x350] sm:$0xff]
    %v227 = vld [vmem:[#allocation5 + $0x358] sm:$0xff]
    %v228 = vld [vmem:[#allocation5 + $0x360] sm:$0xff]
    %v229 = vld [vmem:[#allocation5 + $0x368] sm:$0xff]
    %v230 = vld [vmem:[#allocation5 + $0x370] sm:$0xff]
    %v231 = vld [vmem:[#allocation5 + $0x378] sm:$0xff]
    %v232 = vld [vmem:[#allocation5 + $0x380] sm:$0xff]
    %v233 = vld [vmem:[#allocation5 + $0x388] sm:$0xff]
    %v234 = vld [vmem:[#allocation5 + $0x390] sm:$0xff]
    %v235 = vld [vmem:[#allocation5 + $0x398] sm:$0xff]
    %v236 = vld [vmem:[#allocation5 + $0x3a0] sm:$0xff]
    %v237 = vld [vmem:[#allocation5 + $0x3a8] sm:$0xff]
    %v238 = vld [vmem:[#allocation5 + $0x3b0] sm:$0xff]
    %v239 = vld [vmem:[#allocation5 + $0x3b8] sm:$0xff]
    %v240 = vld [vmem:[#allocation5 + $0x3c0] sm:$0xff]
    %v241 = vld [vmem:[#allocation5 + $0x3c8] sm:$0xff]
    %v242 = vld [vmem:[#allocation5 + $0x3d0] sm:$0xff]
    %v243 = vld [vmem:[#allocation5 + $0x3d8] sm:$0xff]
    %v244 = vld [vmem:[#allocation5 + $0x3e0] sm:$0xff]
    %v245 = vld [vmem:[#allocation5 + $0x3e8] sm:$0xff]
    %v246 = vld [vmem:[#allocation5 + $0x3f0] sm:$0xff]
    %v247 = vld [vmem:[#allocation5 + $0x3f8] sm:$0xff]
    %v248 = vld [vmem:[#allocation5 + $0x400] sm:$0xff]
    %v249 = vld [vmem:[#allocation5 + $0x408] sm:$0xff]
    %v250 = vld [vmem:[#allocation5 + $0x410] sm:$0xff]
    %v251 = vld [vmem:[#allocation5 + $0x418] sm:$0xff]
    %v252 = vld [vmem:[#allocation5 + $0x420] sm:$0xff]
    %v253 = vld [vmem:[#allocation5 + $0x428] sm:$0xff]
    %v254 = vld [vmem:[#allocation5 + $0x430] sm:$0xff]
    %v255 = vld [vmem:[#allocation5 + $0x438] sm:$0xff]
    %v256 = vld [vmem:[#allocation5 + $0x440] sm:$0xff]
    %v257 = vld [vmem:[#allocation5 + $0x448] sm:$0xff]
    %v258 = vld [vmem:[#allocation5 + $0x450] sm:$0xff]
    %v259 = vld [vmem:[#allocation5 + $0x458] sm:$0xff]
    %v260 = vld [vmem:[#allocation5 + $0x460] sm:$0xff]
    %v261 = vld [vmem:[#allocation5 + $0x468] sm:$0xff]
    %v262 = vld [vmem:[#allocation5 + $0x470] sm:$0xff]
    %v263 = vld [vmem:[#allocation5 + $0x478] sm:$0xff]
    %v264 = vld [vmem:[#allocation5 + $0x480] sm:$0xff]
    %v265 = vld [vmem:[#allocation5 + $0x488] sm:$0xff]
    %v266 = vld [vmem:[#allocation5 + $0x490] sm:$0xff]
    %v267 = vld [vmem:[#allocation5 + $0x498] sm:$0xff]
    %v268 = vld [vmem:[#allocation5 + $0x4a0] sm:$0xff]
    %v269 = vld [vmem:[#allocation5 + $0x4a8] sm:$0xff]
    %v270 = vld [vmem:[#allocation5 + $0x4b0] sm:$0xff]
    %v271 = vld [vmem:[#allocation5 + $0x4b8] sm:$0xff]
    %v272 = vld [vmem:[#allocation5 + $0x4c0] sm:$0xff]
    %v273 = vld [vmem:[#allocation5 + $0x4c8] sm:$0xff]
    %v274 = vld [vmem:[#allocation5 + $0x4d0] sm:$0xff]
    %v275 = vld [vmem:[#allocation5 + $0x4d8] sm:$0xff]
    %v276 = vld [vmem:[#allocation5 + $0x4e0] sm:$0xff]
    %v277 = vld [vmem:[#allocation5 + $0x4e8] sm:$0xff]
    %v278 = vld [vmem:[#allocation5 + $0x4f0] sm:$0xff]
    %v279 = vld [vmem:[#allocation5 + $0x4f8] sm:$0xff]
    %v280 = vld [vmem:[#allocation5 + $0x500] sm:$0xff]
    %v281 = vld [vmem:[#allocation5 + $0x508] sm:$0xff]
    %v282 = vld [vmem:[#allocation5 + $0x510] sm:$0xff]
    %v283 = vld [vmem:[#allocation5 + $0x518] sm:$0xff]
    %v284 = vld [vmem:[#allocation5 + $0x520] sm:$0xff]
    %v285 = vld [vmem:[#allocation5 + $0x528] sm:$0xff]
    %v286 = vld [vmem:[#allocation5 + $0x530] sm:$0xff]
    %v287 = vld [vmem:[#allocation5 + $0x538] sm:$0xff]
    %v288 = vld [vmem:[#allocation5 + $0x540] sm:$0xff]
    %v289 = vld [vmem:[#allocation5 + $0x548] sm:$0xff]
    %v290 = vld [vmem:[#allocation5 + $0x550] sm:$0xff]
    %v291 = vld [vmem:[#allocation5 + $0x558] sm:$0xff]
    %v292 = vld [vmem:[#allocation5 + $0x560] sm:$0xff]
    %v293 = vld [vmem:[#allocation5 + $0x568] sm:$0xff]
    %v294 = vld [vmem:[#allocation5 + $0x570] sm:$0xff]
    %v295 = vld [vmem:[#allocation5 + $0x578] sm:$0xff]
    %v296 = vld [vmem:[#allocation5 + $0x580] sm:$0xff]
    %v297 = vld [vmem:[#allocation5 + $0x588] sm:$0xff]
    %v298 = vld [vmem:[#allocation5 + $0x590] sm:$0xff]
    %v299 = vld [vmem:[#allocation5 + $0x598] sm:$0xff]
    %v300 = vld [vmem:[#allocation5 + $0x5a0] sm:$0xff]
    %v301 = vld [vmem:[#allocation5 + $0x5a8] sm:$0xff]
    %v302 = vld [vmem:[#allocation5 + $0x5b0] sm:$0xff]
    %v303 = vld [vmem:[#allocation5 + $0x5b8] sm:$0xff]
    %v304 = vld [vmem:[#allocation5 + $0x5c0] sm:$0xff]
    %v305 = vld [vmem:[#allocation5 + $0x5c8] sm:$0xff]
    %v306 = vld [vmem:[#allocation5 + $0x5d0] sm:$0xff]
    %v307 = vld [vmem:[#allocation5 + $0x5d8] sm:$0xff]
    %v308 = vld [vmem:[#allocation5 + $0x5e0] sm:$0xff]
    %v309 = vld [vmem:[#allocation5 + $0x5e8] sm:$0xff]
    %v310 = vld [vmem:[#allocation5 + $0x5f0] sm:$0xff]
    %v311 = vld [vmem:[#allocation5 + $0x5f8] sm:$0xff]
    %v312 = vld [vmem:[#allocation5 + $0x600] sm:$0xff]
    %v313 = vld [vmem:[#allocation5 + $0x608] sm:$0xff]
    %v314 = vld [vmem:[#allocation5 + $0x610] sm:$0xff]
    %v315 = vld [vmem:[#allocation5 + $0x618] sm:$0xff]
    %v316 = vld [vmem:[#allocation5 + $0x620] sm:$0xff]
    %v317 = vld [vmem:[#allocation5 + $0x628] sm:$0xff]
    %v318 = vld [vmem:[#allocation5 + $0x630] sm:$0xff]
    %v319 = vld [vmem:[#allocation5 + $0x638] sm:$0xff]
    %v320 = vld [vmem:[#allocation5 + $0x640] sm:$0xff]
    %v321 = vld [vmem:[#allocation5 + $0x648] sm:$0xff]
    %v322 = vld [vmem:[#allocation5 + $0x650] sm:$0xff]
    %v323 = vld [vmem:[#allocation5 + $0x658] sm:$0xff]
    %v324 = vld [vmem:[#allocation5 + $0x660] sm:$0xff]
    %v325 = vld [vmem:[#allocation5 + $0x668] sm:$0xff]
    %v326 = vld [vmem:[#allocation5 + $0x670] sm:$0xff]
    %v327 = vld [vmem:[#allocation5 + $0x678] sm:$0xff]
    %v328 = vld [vmem:[#allocation5 + $0x680] sm:$0xff]
    %v329 = vld [vmem:[#allocation5 + $0x688] sm:$0xff]
    %v330 = vld [vmem:[#allocation5 + $0x690] sm:$0xff]
    %v331 = vld [vmem:[#allocation5 + $0x698] sm:$0xff]
    %v332 = vld [vmem:[#allocation5 + $0x6a0] sm:$0xff]
    %v333 = vld [vmem:[#allocation5 + $0x6a8] sm:$0xff]
    %v334 = vld [vmem:[#allocation5 + $0x6b0] sm:$0xff]
    %v335 = vld [vmem:[#allocation5 + $0x6b8] sm:$0xff]
    %v336 = vld [vmem:[#allocation5 + $0x6c0] sm:$0xff]
    %v337 = vld [vmem:[#allocation5 + $0x6c8] sm:$0xff]
    %v338 = vld [vmem:[#allocation5 + $0x6d0] sm:$0xff]
    %v339 = vld [vmem:[#allocation5 + $0x6d8] sm:$0xff]
    %v340 = vld [vmem:[#allocation5 + $0x6e0] sm:$0xff]
    %v341 = vld [vmem:[#allocation5 + $0x6e8] sm:$0xff]
    %v342 = vld [vmem:[#allocation5 + $0x6f0] sm:$0xff]
    %v343 = vld [vmem:[#allocation5 + $0x6f8] sm:$0xff]
    %v344 = vld [vmem:[#allocation5 + $0x700] sm:$0xff]
    %v345 = vld [vmem:[#allocation5 + $0x708] sm:$0xff]
    %v346 = vld [vmem:[#allocation5 + $0x710] sm:$0xff]
    %v347 = vld [vmem:[#allocation5 + $0x718] sm:$0xff]
    %v348 = vld [vmem:[#allocation5 + $0x720] sm:$0xff]
    %v349 = vld [vmem:[#allocation5 + $0x728] sm:$0xff]
    %v350 = vld [vmem:[#allocation5 + $0x730] sm:$0xff]
    %v351 = vld [vmem:[#allocation5 + $0x738] sm:$0xff]
    %v352 = vld [vmem:[#allocation5 + $0x740] sm:$0xff]
    %v353 = vld [vmem:[#allocation5 + $0x748] sm:$0xff]
    %v354 = vld [vmem:[#allocation5 + $0x750] sm:$0xff]
    %v355 = vld [vmem:[#allocation5 + $0x758] sm:$0xff]
    %v356 = vld [vmem:[#allocation5 + $0x760] sm:$0xff]
    %v357 = vld [vmem:[#allocation5 + $0x768] sm:$0xff]
    %v358 = vld [vmem:[#allocation5 + $0x770] sm:$0xff]
    %v359 = vld [vmem:[#allocation5 + $0x778] sm:$0xff]
    %v360 = vld [vmem:[#allocation5 + $0x780] sm:$0xff]
    %v361 = vld [vmem:[#allocation5 + $0x788] sm:$0xff]
    %v362 = vld [vmem:[#allocation5 + $0x790] sm:$0xff]
    %v363 = vld [vmem:[#allocation5 + $0x798] sm:$0xff]
    %v364 = vld [vmem:[#allocation5 + $0x7a0] sm:$0xff]
    %v365 = vld [vmem:[#allocation5 + $0x7a8] sm:$0xff]
    %v366 = vld [vmem:[#allocation5 + $0x7b0] sm:$0xff]
    %v367 = vld [vmem:[#allocation5 + $0x7b8] sm:$0xff]
    %v368 = vld [vmem:[#allocation5 + $0x7c0] sm:$0xff]
    %v369 = vld [vmem:[#allocation5 + $0x7c8] sm:$0xff]
    %v370 = vld [vmem:[#allocation5 + $0x7d0] sm:$0xff]
    %v371 = vld [vmem:[#allocation5 + $0x7d8] sm:$0xff]
    %v372 = vld [vmem:[#allocation5 + $0x7e0] sm:$0xff]
    %v373 = vld [vmem:[#allocation5 + $0x7e8] sm:$0xff]
    %v374 = vld [vmem:[#allocation5 + $0x7f0] sm:$0xff]
    %v375 = vld [vmem:[#allocation5 + $0x7f8] sm:$0xff]
    %v376 = vld [vmem:[#allocation5 + $0x800] sm:$0xff]
    %v377 = vld [vmem:[#allocation5 + $0x808] sm:$0xff]
    %v378 = vld [vmem:[#allocation5 + $0x810] sm:$0xff]
    %v379 = vld [vmem:[#allocation5 + $0x818] sm:$0xff]
    %v380 = vld [vmem:[#allocation5 + $0x820] sm:$0xff]
    %v381 = vld [vmem:[#allocation5 + $0x828] sm:$0xff]
    %v382 = vld [vmem:[#allocation5 + $0x830] sm:$0xff]
    %v383 = vld [vmem:[#allocation5 + $0x838] sm:$0xff]
    %v384 = vld [vmem:[#allocation5 + $0x840] sm:$0xff]
    %v385 = vld [vmem:[#allocation5 + $0x848] sm:$0xff]
    %v386 = vld [vmem:[#allocation5 + $0x850] sm:$0xff]
    %v387 = vld [vmem:[#allocation5 + $0x858] sm:$0xff]
    %v388 = vld [vmem:[#allocation5 + $0x860] sm:$0xff]
    %v389 = vld [vmem:[#allocation5 + $0x868] sm:$0xff]
    %v390 = vld [vmem:[#allocation5 + $0x870] sm:$0xff]
    %v391 = vld [vmem:[#allocation5 + $0x878] sm:$0xff]
    %v392 = vld [vmem:[#allocation5 + $0x880] sm:$0xff]
    %v393 = vld [vmem:[#allocation5 + $0x888] sm:$0xff]
    %v394 = vld [vmem:[#allocation5 + $0x890] sm:$0xff]
    %v395 = vld [vmem:[#allocation5 + $0x898] sm:$0xff]
    %v396 = vld [vmem:[#allocation5 + $0x8a0] sm:$0xff]
    %v397 = vld [vmem:[#allocation5 + $0x8a8] sm:$0xff]
    %v398 = vld [vmem:[#allocation5 + $0x8b0] sm:$0xff]
    %v399 = vld [vmem:[#allocation5 + $0x8b8] sm:$0xff]
    %v400 = vld [vmem:[#allocation5 + $0x8c0] sm:$0xff]
    %v401 = vld [vmem:[#allocation5 + $0x8c8] sm:$0xff]
    %v402 = vld [vmem:[#allocation5 + $0x8d0] sm:$0xff]
    %v403 = vld [vmem:[#allocation5 + $0x8d8] sm:$0xff]
    %v404 = vld [vmem:[#allocation5 + $0x8e0] sm:$0xff]
    %v405 = vld [vmem:[#allocation5 + $0x8e8] sm:$0xff]
    %v406 = vld [vmem:[#allocation5 + $0x8f0] sm:$0xff]
    %v407 = vld [vmem:[#allocation5 + $0x8f8] sm:$0xff]
    %v408 = vld [vmem:[#allocation7] sm:$0xf]
    %v410 = vlaneseq
    %v411 = vshrl.u32 %v410, 7
    %v412 = vsub.s32 0, %v411
    %v413 = vrot.slane %v408, %v412
    %v414 = vlaneseq
    %v415 = vshrl.u32 %v414, 7
    %v416 = vsub.s32 1, %v415
    %v417 = vrot.slane %v408, %v416
    %v418 = vlaneseq
    %v419 = vshrl.u32 %v418, 7
    %v420 = vsub.s32 2, %v419
    %v421 = vrot.slane %v408, %v420
    %v422 = vlaneseq
    %v423 = vshrl.u32 %v422, 7
    %v424 = vsub.s32 3, %v423
    %v425 = vrot.slane %v408, %v424
    %v435 = vunpack.c.l.b16 %v115
    %v436 = vunpack.c.h.b16 %v115
    %v437 = vunpack.c.l.b16 %v116
    %v438 = vunpack.c.h.b16 %v116
    %v439 = vunpack.c.l.b16 %v117
    %v440 = vunpack.c.h.b16 %v117
    %v441 = vunpack.c.l.b16 %v118
    %v442 = vunpack.c.h.b16 %v118
    %v443 = vunpack.c.l.b16 %v119
    %v444 = vpack.c.b16 %v435, %v435
    %v445 = vpack.c.b16 %v436, %v436
    %v446 = vpack.c.b16 %v437, %v437
    %v447 = vpack.c.b16 %v438, %v438
    %v448 = vpack.c.b16 %v439, %v439
    %v449 = vpack.c.b16 %v440, %v440
    %v450 = vpack.c.b16 %v441, %v441
    %v451 = vpack.c.b16 %v442, %v442
    %v452 = vpack.c.b16 %v443, %v443
    %v750 = vunpack.c.l.b16 %v120
    %v751 = vunpack.c.h.b16 %v120
    %v752 = vunpack.c.l.b16 %v121
    %v753 = vunpack.c.h.b16 %v121
    %v754 = vunpack.c.l.b16 %v122
    %v755 = vunpack.c.h.b16 %v122
    %v756 = vunpack.c.l.b16 %v123
    %v757 = vunpack.c.h.b16 %v123
    %v758 = vunpack.c.l.b16 %v124
    %v759 = vunpack.c.h.b16 %v124
    %v760 = vunpack.c.l.b16 %v125
    %v761 = vunpack.c.h.b16 %v125
    %v762 = vunpack.c.l.b16 %v126
    %v763 = vunpack.c.h.b16 %v126
    %v764 = vunpack.c.l.b16 %v127
    %v765 = vunpack.c.h.b16 %v127
    %v766 = vunpack.c.l.b16 %v128
    %v767 = vunpack.c.h.b16 %v128
    %v768 = vunpack.c.l.b16 %v129
    %v769 = vunpack.c.h.b16 %v129
    %v770 = vunpack.c.l.b16 %v130
    %v771 = vunpack.c.h.b16 %v130
    %v772 = vunpack.c.l.b16 %v131
    %v773 = vunpack.c.h.b16 %v131
    %v774 = vunpack.c.l.b16 %v132
    %v775 = vunpack.c.h.b16 %v132
    %v776 = vunpack.c.l.b16 %v133
    %v777 = vunpack.c.h.b16 %v133
    %v778 = vunpack.c.l.b16 %v134
    %v779 = vunpack.c.h.b16 %v134
    %v780 = vunpack.c.l.b16 %v135
    %v781 = vunpack.c.h.b16 %v135
    %v782 = vunpack.c.l.b16 %v136
    %v783 = vunpack.c.h.b16 %v136
    %v784 = vunpack.c.l.b16 %v137
    %v785 = vunpack.c.h.b16 %v137
    %v786 = vunpack.c.l.b16 %v138
    %v787 = vunpack.c.h.b16 %v138
    %v788 = vunpack.c.l.b16 %v139
    %v789 = vunpack.c.h.b16 %v139
    %v790 = vunpack.c.l.b16 %v140
    %v791 = vunpack.c.h.b16 %v140
    %v792 = vunpack.c.l.b16 %v141
    %v793 = vunpack.c.h.b16 %v141
    %v794 = vunpack.c.l.b16 %v142
    %v795 = vunpack.c.h.b16 %v142
    %v796 = vunpack.c.l.b16 %v143
    %v797 = vunpack.c.h.b16 %v143
    %v798 = vunpack.c.l.b16 %v144
    %v799 = vunpack.c.h.b16 %v144
    %v800 = vunpack.c.l.b16 %v145
    %v801 = vunpack.c.h.b16 %v145
    %v802 = vunpack.c.l.b16 %v146
    %v803 = vunpack.c.h.b16 %v146
    %v804 = vunpack.c.l.b16 %v147
    %v805 = vunpack.c.h.b16 %v147
    %v806 = vunpack.c.l.b16 %v148
    %v807 = vunpack.c.h.b16 %v148
    %v808 = vunpack.c.l.b16 %v149
    %v809 = vunpack.c.h.b16 %v149
    %v810 = vunpack.c.l.b16 %v150
    %v811 = vunpack.c.h.b16 %v150
    %v812 = vunpack.c.l.b16 %v151
    %v813 = vunpack.c.h.b16 %v151
    %v814 = vunpack.c.l.b16 %v152
    %v815 = vunpack.c.h.b16 %v152
    %v816 = vunpack.c.l.b16 %v153
    %v817 = vunpack.c.h.b16 %v153
    %v818 = vunpack.c.l.b16 %v154
    %v819 = vunpack.c.h.b16 %v154
    %v820 = vunpack.c.l.b16 %v155
    %v821 = vunpack.c.h.b16 %v155
    %v822 = vunpack.c.l.b16 %v156
    %v823 = vunpack.c.h.b16 %v156
    %v824 = vunpack.c.l.b16 %v157
    %v825 = vunpack.c.h.b16 %v157
    %v826 = vunpack.c.l.b16 %v158
    %v827 = vunpack.c.h.b16 %v158
    %v828 = vunpack.c.l.b16 %v159
    %v829 = vunpack.c.h.b16 %v159
    %v830 = vunpack.c.l.b16 %v160
    %v831 = vunpack.c.h.b16 %v160
    %v832 = vunpack.c.l.b16 %v161
    %v833 = vunpack.c.h.b16 %v161
    %v834 = vunpack.c.l.b16 %v162
    %v835 = vunpack.c.h.b16 %v162
    %v836 = vunpack.c.l.b16 %v163
    %v837 = vunpack.c.h.b16 %v163
    %v838 = vunpack.c.l.b16 %v164
    %v839 = vunpack.c.h.b16 %v164
    %v840 = vunpack.c.l.b16 %v165
    %v841 = vunpack.c.h.b16 %v165
    %v842 = vunpack.c.l.b16 %v166
    %v843 = vunpack.c.h.b16 %v166
    %v844 = vunpack.c.l.b16 %v167
    %v845 = vunpack.c.h.b16 %v167
    %v846 = vunpack.c.l.b16 %v168
    %v847 = vunpack.c.h.b16 %v168
    %v848 = vunpack.c.l.b16 %v169
    %v849 = vunpack.c.h.b16 %v169
    %v850 = vunpack.c.l.b16 %v170
    %v851 = vunpack.c.h.b16 %v170
    %v852 = vunpack.c.l.b16 %v171
    %v853 = vunpack.c.h.b16 %v171
    %v854 = vunpack.c.l.b16 %v172
    %v855 = vunpack.c.h.b16 %v172
    %v856 = vunpack.c.l.b16 %v173
    %v857 = vunpack.c.h.b16 %v173
    %v858 = vunpack.c.l.b16 %v174
    %v859 = vunpack.c.h.b16 %v174
    %v860 = vunpack.c.l.b16 %v175
    %v861 = vunpack.c.h.b16 %v175
    %v862 = vunpack.c.l.b16 %v176
    %v863 = vunpack.c.h.b16 %v176
    %v864 = vunpack.c.l.b16 %v177
    %v865 = vunpack.c.h.b16 %v177
    %v866 = vunpack.c.l.b16 %v178
    %v867 = vunpack.c.h.b16 %v178
    %v868 = vunpack.c.l.b16 %v179
    %v869 = vunpack.c.h.b16 %v179
    %v870 = vunpack.c.l.b16 %v180
    %v871 = vunpack.c.h.b16 %v180
    %v872 = vunpack.c.l.b16 %v181
    %v873 = vunpack.c.h.b16 %v181
    %v874 = vunpack.c.l.b16 %v182
    %v875 = vunpack.c.h.b16 %v182
    %v876 = vunpack.c.l.b16 %v183
    %v877 = vunpack.c.h.b16 %v183
    %v878 = vunpack.c.l.b16 %v184
    %v879 = vunpack.c.h.b16 %v184
    %v880 = vunpack.c.l.b16 %v185
    %v881 = vunpack.c.h.b16 %v185
    %v882 = vunpack.c.l.b16 %v186
    %v883 = vunpack.c.h.b16 %v186
    %v884 = vunpack.c.l.b16 %v187
    %v885 = vunpack.c.h.b16 %v187
    %v886 = vunpack.c.l.b16 %v188
    %v887 = vunpack.c.h.b16 %v188
    %v888 = vunpack.c.l.b16 %v189
    %v889 = vunpack.c.h.b16 %v189
    %v890 = vunpack.c.l.b16 %v190
    %v891 = vunpack.c.h.b16 %v190
    %v892 = vunpack.c.l.b16 %v191
    %v893 = vunpack.c.h.b16 %v191
    %v894 = vunpack.c.l.b16 %v192
    %v895 = vunpack.c.h.b16 %v192
    %v896 = vunpack.c.l.b16 %v193
    %v897 = vunpack.c.h.b16 %v193
    %v898 = vunpack.c.l.b16 %v194
    %v899 = vunpack.c.h.b16 %v194
    %v900 = vunpack.c.l.b16 %v195
    %v901 = vunpack.c.h.b16 %v195
    %v902 = vunpack.c.l.b16 %v196
    %v903 = vunpack.c.h.b16 %v196
    %v904 = vunpack.c.l.b16 %v197
    %v905 = vunpack.c.h.b16 %v197
    %v906 = vunpack.c.l.b16 %v198
    %v907 = vunpack.c.h.b16 %v198
    %v908 = vunpack.c.l.b16 %v199
    %v909 = vunpack.c.h.b16 %v199
    %v910 = vunpack.c.l.b16 %v200
    %v911 = vunpack.c.h.b16 %v200
    %v912 = vunpack.c.l.b16 %v201
    %v913 = vunpack.c.h.b16 %v201
    %v914 = vunpack.c.l.b16 %v202
    %v915 = vunpack.c.h.b16 %v202
    %v916 = vunpack.c.l.b16 %v203
    %v917 = vunpack.c.h.b16 %v203
    %v918 = vunpack.c.l.b16 %v204
    %v919 = vunpack.c.h.b16 %v204
    %v920 = vunpack.c.l.b16 %v205
    %v921 = vunpack.c.h.b16 %v205
    %v922 = vunpack.c.l.b16 %v206
    %v923 = vunpack.c.h.b16 %v206
    %v924 = vunpack.c.l.b16 %v207
    %v925 = vunpack.c.h.b16 %v207
    %v926 = vunpack.c.l.b16 %v208
    %v927 = vunpack.c.h.b16 %v208
    %v928 = vunpack.c.l.b16 %v209
    %v929 = vunpack.c.h.b16 %v209
    %v930 = vunpack.c.l.b16 %v210
    %v931 = vunpack.c.h.b16 %v210
    %v932 = vunpack.c.l.b16 %v211
    %v933 = vunpack.c.h.b16 %v211
    %v934 = vunpack.c.l.b16 %v212
    %v935 = vunpack.c.h.b16 %v212
    %v936 = vunpack.c.l.b16 %v213
    %v937 = vunpack.c.h.b16 %v213
    %v938 = vunpack.c.l.b16 %v214
    %v939 = vunpack.c.h.b16 %v214
    %v940 = vunpack.c.l.b16 %v215
    %v941 = vunpack.c.h.b16 %v215
    %v942 = vunpack.c.l.b16 %v216
    %v943 = vunpack.c.h.b16 %v216
    %v944 = vunpack.c.l.b16 %v217
    %v945 = vunpack.c.h.b16 %v217
    %v946 = vunpack.c.l.b16 %v218
    %v947 = vunpack.c.h.b16 %v218
    %v948 = vunpack.c.l.b16 %v219
    %v949 = vunpack.c.h.b16 %v219
    %v950 = vunpack.c.l.b16 %v220
    %v951 = vunpack.c.h.b16 %v220
    %v952 = vunpack.c.l.b16 %v221
    %v953 = vunpack.c.h.b16 %v221
    %v954 = vunpack.c.l.b16 %v222
    %v955 = vunpack.c.h.b16 %v222
    %v956 = vunpack.c.l.b16 %v223
    %v957 = vunpack.c.h.b16 %v223
    %v958 = vunpack.c.l.b16 %v224
    %v959 = vunpack.c.h.b16 %v224
    %v960 = vunpack.c.l.b16 %v225
    %v961 = vunpack.c.h.b16 %v225
    %v962 = vunpack.c.l.b16 %v226
    %v963 = vunpack.c.h.b16 %v226
    %v964 = vunpack.c.l.b16 %v227
    %v965 = vunpack.c.h.b16 %v227
    %v966 = vunpack.c.l.b16 %v228
    %v967 = vunpack.c.h.b16 %v228
    %v968 = vunpack.c.l.b16 %v229
    %v969 = vunpack.c.h.b16 %v229
    %v970 = vunpack.c.l.b16 %v230
    %v971 = vunpack.c.h.b16 %v230
    %v972 = vunpack.c.l.b16 %v231
    %v973 = vunpack.c.h.b16 %v231
    %v974 = vunpack.c.l.b16 %v232
    %v975 = vunpack.c.h.b16 %v232
    %v976 = vunpack.c.l.b16 %v233
    %v977 = vunpack.c.h.b16 %v233
    %v978 = vunpack.c.l.b16 %v234
    %v979 = vunpack.c.h.b16 %v234
    %v980 = vunpack.c.l.b16 %v235
    %v981 = vunpack.c.h.b16 %v235
    %v982 = vunpack.c.l.b16 %v236
    %v983 = vunpack.c.h.b16 %v236
    %v984 = vunpack.c.l.b16 %v237
    %v985 = vunpack.c.h.b16 %v237
    %v986 = vunpack.c.l.b16 %v238
    %v987 = vunpack.c.h.b16 %v238
    %v988 = vunpack.c.l.b16 %v239
    %v989 = vunpack.c.h.b16 %v239
    %v990 = vunpack.c.l.b16 %v240
    %v991 = vunpack.c.h.b16 %v240
    %v992 = vunpack.c.l.b16 %v241
    %v993 = vunpack.c.h.b16 %v241
    %v994 = vunpack.c.l.b16 %v242
    %v995 = vunpack.c.h.b16 %v242
    %v996 = vunpack.c.l.b16 %v243
    %v997 = vunpack.c.h.b16 %v243
    %v998 = vunpack.c.l.b16 %v244
    %v999 = vunpack.c.h.b16 %v244
    %v1000 = vunpack.c.l.b16 %v245
    %v1001 = vunpack.c.h.b16 %v245
    %v1002 = vunpack.c.l.b16 %v246
    %v1003 = vunpack.c.h.b16 %v246
    %v1004 = vunpack.c.l.b16 %v247
    %v1005 = vunpack.c.h.b16 %v247
    %v1006 = vunpack.c.l.b16 %v248
    %v1007 = vunpack.c.h.b16 %v248
    %v1008 = vunpack.c.l.b16 %v249
    %v1009 = vunpack.c.h.b16 %v249
    %v1010 = vunpack.c.l.b16 %v250
    %v1011 = vunpack.c.h.b16 %v250
    %v1012 = vunpack.c.l.b16 %v251
    %v1013 = vunpack.c.h.b16 %v251
    %v1014 = vunpack.c.l.b16 %v252
    %v1015 = vunpack.c.h.b16 %v252
    %v1016 = vunpack.c.l.b16 %v253
    %v1017 = vunpack.c.h.b16 %v253
    %v1018 = vunpack.c.l.b16 %v254
    %v1019 = vunpack.c.h.b16 %v254
    %v1020 = vunpack.c.l.b16 %v255
    %v1021 = vunpack.c.h.b16 %v255
    %v1022 = vunpack.c.l.b16 %v256
    %v1023 = vunpack.c.h.b16 %v256
    %v1024 = vunpack.c.l.b16 %v257
    %v1025 = vunpack.c.h.b16 %v257
    %v1026 = vunpack.c.l.b16 %v258
    %v1027 = vunpack.c.h.b16 %v258
    %v1028 = vunpack.c.l.b16 %v259
    %v1029 = vunpack.c.h.b16 %v259
    %v1030 = vunpack.c.l.b16 %v260
    %v1031 = vunpack.c.h.b16 %v260
    %v1032 = vunpack.c.l.b16 %v261
    %v1033 = vunpack.c.h.b16 %v261
    %v1034 = vunpack.c.l.b16 %v262
    %v1035 = vunpack.c.h.b16 %v262
    %v1036 = vunpack.c.l.b16 %v263
    %v1037 = vunpack.c.h.b16 %v263
    %v1038 = vunpack.c.l.b16 %v264
    %v1039 = vunpack.c.h.b16 %v264
    %v1040 = vunpack.c.l.b16 %v265
    %v1041 = vunpack.c.h.b16 %v265
    %v1042 = vunpack.c.l.b16 %v266
    %v1043 = vunpack.c.h.b16 %v266
    %v1044 = vunpack.c.l.b16 %v267
    %v1045 = vunpack.c.h.b16 %v267
    %v1046 = vunpack.c.l.b16 %v268
    %v1047 = vunpack.c.h.b16 %v268
    %v1048 = vunpack.c.l.b16 %v269
    %v1049 = vunpack.c.h.b16 %v269
    %v1050 = vunpack.c.l.b16 %v270
    %v1051 = vunpack.c.h.b16 %v270
    %v1052 = vunpack.c.l.b16 %v271
    %v1053 = vunpack.c.h.b16 %v271
    %v1054 = vunpack.c.l.b16 %v272
    %v1055 = vunpack.c.h.b16 %v272
    %v1056 = vunpack.c.l.b16 %v273
    %v1057 = vunpack.c.h.b16 %v273
    %v1058 = vunpack.c.l.b16 %v274
    %v1059 = vunpack.c.h.b16 %v274
    %v1060 = vunpack.c.l.b16 %v275
    %v1061 = vunpack.c.h.b16 %v275
    %v1062 = vunpack.c.l.b16 %v276
    %v1063 = vunpack.c.h.b16 %v276
    %v1064 = vunpack.c.l.b16 %v277
    %v1065 = vunpack.c.h.b16 %v277
    %v1066 = vunpack.c.l.b16 %v278
    %v1067 = vunpack.c.h.b16 %v278
    %v1068 = vunpack.c.l.b16 %v279
    %v1069 = vunpack.c.h.b16 %v279
    %v1070 = vunpack.c.l.b16 %v280
    %v1071 = vunpack.c.h.b16 %v280
    %v1072 = vunpack.c.l.b16 %v281
    %v1073 = vunpack.c.h.b16 %v281
    %v1074 = vunpack.c.l.b16 %v282
    %v1075 = vunpack.c.h.b16 %v282
    %v1076 = vunpack.c.l.b16 %v283
    %v1077 = vunpack.c.h.b16 %v283
    %v1078 = vunpack.c.l.b16 %v284
    %v1079 = vunpack.c.h.b16 %v284
    %v1080 = vunpack.c.l.b16 %v285
    %v1081 = vunpack.c.h.b16 %v285
    %v1082 = vunpack.c.l.b16 %v286
    %v1083 = vunpack.c.h.b16 %v286
    %v1084 = vunpack.c.l.b16 %v287
    %v1085 = vunpack.c.h.b16 %v287
    %v1086 = vunpack.c.l.b16 %v288
    %v1087 = vunpack.c.h.b16 %v288
    %v1088 = vunpack.c.l.b16 %v289
    %v1089 = vunpack.c.h.b16 %v289
    %v1090 = vunpack.c.l.b16 %v290
    %v1091 = vunpack.c.h.b16 %v290
    %v1092 = vunpack.c.l.b16 %v291
    %v1093 = vunpack.c.h.b16 %v291
    %v1094 = vunpack.c.l.b16 %v292
    %v1095 = vunpack.c.h.b16 %v292
    %v1096 = vunpack.c.l.b16 %v293
    %v1097 = vunpack.c.h.b16 %v293
    %v1098 = vunpack.c.l.b16 %v294
    %v1099 = vunpack.c.h.b16 %v294
    %v1100 = vunpack.c.l.b16 %v295
    %v1101 = vunpack.c.h.b16 %v295
    %v1102 = vunpack.c.l.b16 %v296
    %v1103 = vunpack.c.h.b16 %v296
    %v1104 = vunpack.c.l.b16 %v297
    %v1105 = vunpack.c.h.b16 %v297
    %v1106 = vunpack.c.l.b16 %v298
    %v1107 = vunpack.c.h.b16 %v298
    %v1108 = vunpack.c.l.b16 %v299
    %v1109 = vunpack.c.h.b16 %v299
    %v1110 = vunpack.c.l.b16 %v300
    %v1111 = vunpack.c.h.b16 %v300
    %v1112 = vunpack.c.l.b16 %v301
    %v1113 = vunpack.c.h.b16 %v301
    %v1114 = vunpack.c.l.b16 %v302
    %v1115 = vunpack.c.h.b16 %v302
    %v1116 = vunpack.c.l.b16 %v303
    %v1117 = vunpack.c.h.b16 %v303
    %v1118 = vunpack.c.l.b16 %v304
    %v1119 = vunpack.c.h.b16 %v304
    %v1120 = vunpack.c.l.b16 %v305
    %v1121 = vunpack.c.h.b16 %v305
    %v1122 = vunpack.c.l.b16 %v306
    %v1123 = vunpack.c.h.b16 %v306
    %v1124 = vunpack.c.l.b16 %v307
    %v1125 = vunpack.c.h.b16 %v307
    %v1126 = vunpack.c.l.b16 %v308
    %v1127 = vunpack.c.h.b16 %v308
    %v1128 = vunpack.c.l.b16 %v309
    %v1129 = vunpack.c.h.b16 %v309
    %v1130 = vunpack.c.l.b16 %v310
    %v1131 = vunpack.c.h.b16 %v310
    %v1132 = vunpack.c.l.b16 %v311
    %v1133 = vunpack.c.h.b16 %v311
    %v1134 = vunpack.c.l.b16 %v312
    %v1135 = vunpack.c.h.b16 %v312
    %v1136 = vunpack.c.l.b16 %v313
    %v1137 = vunpack.c.h.b16 %v313
    %v1138 = vunpack.c.l.b16 %v314
    %v1139 = vunpack.c.h.b16 %v314
    %v1140 = vunpack.c.l.b16 %v315
    %v1141 = vunpack.c.h.b16 %v315
    %v1142 = vunpack.c.l.b16 %v316
    %v1143 = vunpack.c.h.b16 %v316
    %v1144 = vunpack.c.l.b16 %v317
    %v1145 = vunpack.c.h.b16 %v317
    %v1146 = vunpack.c.l.b16 %v318
    %v1147 = vunpack.c.h.b16 %v318
    %v1148 = vunpack.c.l.b16 %v319
    %v1149 = vunpack.c.h.b16 %v319
    %v1150 = vunpack.c.l.b16 %v320
    %v1151 = vunpack.c.h.b16 %v320
    %v1152 = vunpack.c.l.b16 %v321
    %v1153 = vunpack.c.h.b16 %v321
    %v1154 = vunpack.c.l.b16 %v322
    %v1155 = vunpack.c.h.b16 %v322
    %v1156 = vunpack.c.l.b16 %v323
    %v1157 = vunpack.c.h.b16 %v323
    %v1158 = vunpack.c.l.b16 %v324
    %v1159 = vunpack.c.h.b16 %v324
    %v1160 = vunpack.c.l.b16 %v325
    %v1161 = vunpack.c.h.b16 %v325
    %v1162 = vunpack.c.l.b16 %v326
    %v1163 = vunpack.c.h.b16 %v326
    %v1164 = vunpack.c.l.b16 %v327
    %v1165 = vunpack.c.h.b16 %v327
    %v1166 = vunpack.c.l.b16 %v328
    %v1167 = vunpack.c.h.b16 %v328
    %v1168 = vunpack.c.l.b16 %v329
    %v1169 = vunpack.c.h.b16 %v329
    %v1170 = vunpack.c.l.b16 %v330
    %v1171 = vunpack.c.h.b16 %v330
    %v1172 = vunpack.c.l.b16 %v331
    %v1173 = vunpack.c.h.b16 %v331
    %v1174 = vunpack.c.l.b16 %v332
    %v1175 = vunpack.c.h.b16 %v332
    %v1176 = vunpack.c.l.b16 %v333
    %v1177 = vunpack.c.h.b16 %v333
    %v1178 = vunpack.c.l.b16 %v334
    %v1179 = vunpack.c.h.b16 %v334
    %v1180 = vunpack.c.l.b16 %v335
    %v1181 = vunpack.c.h.b16 %v335
    %v1182 = vunpack.c.l.b16 %v336
    %v1183 = vunpack.c.h.b16 %v336
    %v1184 = vunpack.c.l.b16 %v337
    %v1185 = vunpack.c.h.b16 %v337
    %v1186 = vunpack.c.l.b16 %v338
    %v1187 = vunpack.c.h.b16 %v338
    %v1188 = vunpack.c.l.b16 %v339
    %v1189 = vunpack.c.h.b16 %v339
    %v1190 = vunpack.c.l.b16 %v340
    %v1191 = vunpack.c.h.b16 %v340
    %v1192 = vunpack.c.l.b16 %v341
    %v1193 = vunpack.c.h.b16 %v341
    %v1194 = vunpack.c.l.b16 %v342
    %v1195 = vunpack.c.h.b16 %v342
    %v1196 = vunpack.c.l.b16 %v343
    %v1197 = vunpack.c.h.b16 %v343
    %v1198 = vunpack.c.l.b16 %v344
    %v1199 = vunpack.c.h.b16 %v344
    %v1200 = vunpack.c.l.b16 %v345
    %v1201 = vunpack.c.h.b16 %v345
    %v1202 = vunpack.c.l.b16 %v346
    %v1203 = vunpack.c.h.b16 %v346
    %v1204 = vunpack.c.l.b16 %v347
    %v1205 = vunpack.c.h.b16 %v347
    %v1206 = vunpack.c.l.b16 %v348
    %v1207 = vunpack.c.h.b16 %v348
    %v1208 = vunpack.c.l.b16 %v349
    %v1209 = vunpack.c.h.b16 %v349
    %v1210 = vunpack.c.l.b16 %v350
    %v1211 = vunpack.c.h.b16 %v350
    %v1212 = vunpack.c.l.b16 %v351
    %v1213 = vunpack.c.h.b16 %v351
    %v1214 = vunpack.c.l.b16 %v352
    %v1215 = vunpack.c.h.b16 %v352
    %v1216 = vunpack.c.l.b16 %v353
    %v1217 = vunpack.c.h.b16 %v353
    %v1218 = vunpack.c.l.b16 %v354
    %v1219 = vunpack.c.h.b16 %v354
    %v1220 = vunpack.c.l.b16 %v355
    %v1221 = vunpack.c.h.b16 %v355
    %v1222 = vunpack.c.l.b16 %v356
    %v1223 = vunpack.c.h.b16 %v356
    %v1224 = vunpack.c.l.b16 %v357
    %v1225 = vunpack.c.h.b16 %v357
    %v1226 = vunpack.c.l.b16 %v358
    %v1227 = vunpack.c.h.b16 %v358
    %v1228 = vunpack.c.l.b16 %v359
    %v1229 = vunpack.c.h.b16 %v359
    %v1230 = vunpack.c.l.b16 %v360
    %v1231 = vunpack.c.h.b16 %v360
    %v1232 = vunpack.c.l.b16 %v361
    %v1233 = vunpack.c.h.b16 %v361
    %v1234 = vunpack.c.l.b16 %v362
    %v1235 = vunpack.c.h.b16 %v362
    %v1236 = vunpack.c.l.b16 %v363
    %v1237 = vunpack.c.h.b16 %v363
    %v1238 = vunpack.c.l.b16 %v364
    %v1239 = vunpack.c.h.b16 %v364
    %v1240 = vunpack.c.l.b16 %v365
    %v1241 = vunpack.c.h.b16 %v365
    %v1242 = vunpack.c.l.b16 %v366
    %v1243 = vunpack.c.h.b16 %v366
    %v1244 = vunpack.c.l.b16 %v367
    %v1245 = vunpack.c.h.b16 %v367
    %v1246 = vunpack.c.l.b16 %v368
    %v1247 = vunpack.c.h.b16 %v368
    %v1248 = vunpack.c.l.b16 %v369
    %v1249 = vunpack.c.h.b16 %v369
    %v1250 = vunpack.c.l.b16 %v370
    %v1251 = vunpack.c.h.b16 %v370
    %v1252 = vunpack.c.l.b16 %v371
    %v1253 = vunpack.c.h.b16 %v371
    %v1254 = vunpack.c.l.b16 %v372
    %v1255 = vunpack.c.h.b16 %v372
    %v1256 = vunpack.c.l.b16 %v373
    %v1257 = vunpack.c.h.b16 %v373
    %v1258 = vunpack.c.l.b16 %v374
    %v1259 = vunpack.c.h.b16 %v374
    %v1260 = vunpack.c.l.b16 %v375
    %v1261 = vunpack.c.h.b16 %v375
    %v1262 = vunpack.c.l.b16 %v376
    %v1263 = vunpack.c.h.b16 %v376
    %v1264 = vunpack.c.l.b16 %v377
    %v1265 = vunpack.c.h.b16 %v377
    %v1266 = vunpack.c.l.b16 %v378
    %v1267 = vunpack.c.h.b16 %v378
    %v1268 = vunpack.c.l.b16 %v379
    %v1269 = vunpack.c.h.b16 %v379
    %v1270 = vunpack.c.l.b16 %v380
    %v1271 = vunpack.c.h.b16 %v380
    %v1272 = vunpack.c.l.b16 %v381
    %v1273 = vunpack.c.h.b16 %v381
    %v1274 = vunpack.c.l.b16 %v382
    %v1275 = vunpack.c.h.b16 %v382
    %v1276 = vunpack.c.l.b16 %v383
    %v1277 = vunpack.c.h.b16 %v383
    %v1278 = vunpack.c.l.b16 %v384
    %v1279 = vunpack.c.h.b16 %v384
    %v1280 = vunpack.c.l.b16 %v385
    %v1281 = vunpack.c.h.b16 %v385
    %v1282 = vunpack.c.l.b16 %v386
    %v1283 = vunpack.c.h.b16 %v386
    %v1284 = vunpack.c.l.b16 %v387
    %v1285 = vunpack.c.h.b16 %v387
    %v1286 = vunpack.c.l.b16 %v388
    %v1287 = vunpack.c.h.b16 %v388
    %v1288 = vunpack.c.l.b16 %v389
    %v1289 = vunpack.c.h.b16 %v389
    %v1290 = vunpack.c.l.b16 %v390
    %v1291 = vunpack.c.h.b16 %v390
    %v1292 = vunpack.c.l.b16 %v391
    %v1293 = vunpack.c.h.b16 %v391
    %v1294 = vunpack.c.l.b16 %v392
    %v1295 = vunpack.c.h.b16 %v392
    %v1296 = vunpack.c.l.b16 %v393
    %v1297 = vunpack.c.h.b16 %v393
    %v1298 = vunpack.c.l.b16 %v394
    %v1299 = vunpack.c.h.b16 %v394
    %v1300 = vunpack.c.l.b16 %v395
    %v1301 = vunpack.c.h.b16 %v395
    %v1302 = vunpack.c.l.b16 %v396
    %v1303 = vunpack.c.h.b16 %v396
    %v1304 = vunpack.c.l.b16 %v397
    %v1305 = vunpack.c.h.b16 %v397
    %v1306 = vunpack.c.l.b16 %v398
    %v1307 = vunpack.c.h.b16 %v398
    %v1308 = vunpack.c.l.b16 %v399
    %v1309 = vunpack.c.h.b16 %v399
    %v1310 = vunpack.c.l.b16 %v400
    %v1311 = vunpack.c.h.b16 %v400
    %v1312 = vunpack.c.l.b16 %v401
    %v1313 = vunpack.c.h.b16 %v401
    %v1314 = vunpack.c.l.b16 %v402
    %v1315 = vunpack.c.h.b16 %v402
    %v1316 = vunpack.c.l.b16 %v403
    %v1317 = vunpack.c.h.b16 %v403
    %v1318 = vunpack.c.l.b16 %v404
    %v1319 = vunpack.c.h.b16 %v404
    %v1320 = vunpack.c.l.b16 %v405
    %v1321 = vunpack.c.h.b16 %v405
    %v1322 = vunpack.c.l.b16 %v406
    %v1323 = vunpack.c.h.b16 %v406
    %v1324 = vunpack.c.l.b16 %v407
    %v1325 = vunpack.c.h.b16 %v407
    %v1326 = vpack.c.b16 %v754, %v750
    %v1327 = vpack.c.b16 %v755, %v751
    %v1328 = vpack.c.b16 %v756, %v752
    %v1329 = vpack.c.b16 %v757, %v753
    %v1330 = vpack.c.b16 %v762, %v758
    %v1331 = vpack.c.b16 %v763, %v759
    %v1332 = vpack.c.b16 %v764, %v760
    %v1333 = vpack.c.b16 %v765, %v761
    %v1334 = vpack.c.b16 %v770, %v766
    %v1335 = vpack.c.b16 %v771, %v767
    %v1336 = vpack.c.b16 %v772, %v768
    %v1337 = vpack.c.b16 %v773, %v769
    %v1338 = vpack.c.b16 %v778, %v774
    %v1339 = vpack.c.b16 %v779, %v775
    %v1340 = vpack.c.b16 %v780, %v776
    %v1341 = vpack.c.b16 %v781, %v777
    %v1342 = vpack.c.b16 %v786, %v782
    %v1343 = vpack.c.b16 %v787, %v783
    %v1344 = vpack.c.b16 %v788, %v784
    %v1345 = vpack.c.b16 %v789, %v785
    %v1346 = vpack.c.b16 %v794, %v790
    %v1347 = vpack.c.b16 %v795, %v791
    %v1348 = vpack.c.b16 %v796, %v792
    %v1349 = vpack.c.b16 %v797, %v793
    %v1350 = vpack.c.b16 %v802, %v798
    %v1351 = vpack.c.b16 %v803, %v799
    %v1352 = vpack.c.b16 %v804, %v800
    %v1353 = vpack.c.b16 %v805, %v801
    %v1354 = vpack.c.b16 %v810, %v806
    %v1355 = vpack.c.b16 %v811, %v807
    %v1356 = vpack.c.b16 %v812, %v808
    %v1357 = vpack.c.b16 %v813, %v809
    %v1358 = vpack.c.b16 %v818, %v814
    %v1359 = vpack.c.b16 %v819, %v815
    %v1360 = vpack.c.b16 %v820, %v816
    %v1361 = vpack.c.b16 %v821, %v817
    %v1362 = vpack.c.b16 %v826, %v822
    %v1363 = vpack.c.b16 %v827, %v823
    %v1364 = vpack.c.b16 %v828, %v824
    %v1365 = vpack.c.b16 %v829, %v825
    %v1366 = vpack.c.b16 %v834, %v830
    %v1367 = vpack.c.b16 %v835, %v831
    %v1368 = vpack.c.b16 %v836, %v832
    %v1369 = vpack.c.b16 %v837, %v833
    %v1370 = vpack.c.b16 %v842, %v838
    %v1371 = vpack.c.b16 %v843, %v839
    %v1372 = vpack.c.b16 %v844, %v840
    %v1373 = vpack.c.b16 %v845, %v841
    %v1374 = vpack.c.b16 %v850, %v846
    %v1375 = vpack.c.b16 %v851, %v847
    %v1376 = vpack.c.b16 %v852, %v848
    %v1377 = vpack.c.b16 %v853, %v849
    %v1378 = vpack.c.b16 %v858, %v854
    %v1379 = vpack.c.b16 %v859, %v855
    %v1380 = vpack.c.b16 %v860, %v856
    %v1381 = vpack.c.b16 %v861, %v857
    %v1382 = vpack.c.b16 %v866, %v862
    %v1383 = vpack.c.b16 %v867, %v863
    %v1384 = vpack.c.b16 %v868, %v864
    %v1385 = vpack.c.b16 %v869, %v865
    %v1386 = vpack.c.b16 %v874, %v870
    %v1387 = vpack.c.b16 %v875, %v871
    %v1388 = vpack.c.b16 %v876, %v872
    %v1389 = vpack.c.b16 %v877, %v873
    %v1390 = vpack.c.b16 %v882, %v878
    %v1391 = vpack.c.b16 %v883, %v879
    %v1392 = vpack.c.b16 %v884, %v880
    %v1393 = vpack.c.b16 %v885, %v881
    %v1394 = vpack.c.b16 %v890, %v886
    %v1395 = vpack.c.b16 %v891, %v887
    %v1396 = vpack.c.b16 %v892, %v888
    %v1397 = vpack.c.b16 %v893, %v889
    %v1398 = vpack.c.b16 %v898, %v894
    %v1399 = vpack.c.b16 %v899, %v895
    %v1400 = vpack.c.b16 %v900, %v896
    %v1401 = vpack.c.b16 %v901, %v897
    %v1402 = vpack.c.b16 %v906, %v902
    %v1403 = vpack.c.b16 %v907, %v903
    %v1404 = vpack.c.b16 %v908, %v904
    %v1405 = vpack.c.b16 %v909, %v905
    %v1406 = vpack.c.b16 %v914, %v910
    %v1407 = vpack.c.b16 %v915, %v911
    %v1408 = vpack.c.b16 %v916, %v912
    %v1409 = vpack.c.b16 %v917, %v913
    %v1410 = vpack.c.b16 %v922, %v918
    %v1411 = vpack.c.b16 %v923, %v919
    %v1412 = vpack.c.b16 %v924, %v920
    %v1413 = vpack.c.b16 %v925, %v921
    %v1414 = vpack.c.b16 %v930, %v926
    %v1415 = vpack.c.b16 %v931, %v927
    %v1416 = vpack.c.b16 %v932, %v928
    %v1417 = vpack.c.b16 %v933, %v929
    %v1418 = vpack.c.b16 %v938, %v934
    %v1419 = vpack.c.b16 %v939, %v935
    %v1420 = vpack.c.b16 %v940, %v936
    %v1421 = vpack.c.b16 %v941, %v937
    %v1422 = vpack.c.b16 %v946, %v942
    %v1423 = vpack.c.b16 %v947, %v943
    %v1424 = vpack.c.b16 %v948, %v944
    %v1425 = vpack.c.b16 %v949, %v945
    %v1426 = vpack.c.b16 %v954, %v950
    %v1427 = vpack.c.b16 %v955, %v951
    %v1428 = vpack.c.b16 %v956, %v952
    %v1429 = vpack.c.b16 %v957, %v953
    %v1430 = vpack.c.b16 %v962, %v958
    %v1431 = vpack.c.b16 %v963, %v959
    %v1432 = vpack.c.b16 %v964, %v960
    %v1433 = vpack.c.b16 %v965, %v961
    %v1434 = vpack.c.b16 %v970, %v966
    %v1435 = vpack.c.b16 %v971, %v967
    %v1436 = vpack.c.b16 %v972, %v968
    %v1437 = vpack.c.b16 %v973, %v969
    %v1438 = vpack.c.b16 %v978, %v974
    %v1439 = vpack.c.b16 %v979, %v975
    %v1440 = vpack.c.b16 %v980, %v976
    %v1441 = vpack.c.b16 %v981, %v977
    %v1442 = vpack.c.b16 %v986, %v982
    %v1443 = vpack.c.b16 %v987, %v983
    %v1444 = vpack.c.b16 %v988, %v984
    %v1445 = vpack.c.b16 %v989, %v985
    %v1446 = vpack.c.b16 %v994, %v990
    %v1447 = vpack.c.b16 %v995, %v991
    %v1448 = vpack.c.b16 %v996, %v992
    %v1449 = vpack.c.b16 %v997, %v993
    %v1450 = vpack.c.b16 %v1002, %v998
    %v1451 = vpack.c.b16 %v1003, %v999
    %v1452 = vpack.c.b16 %v1004, %v1000
    %v1453 = vpack.c.b16 %v1005, %v1001
    %v1454 = vpack.c.b16 %v1010, %v1006
    %v1455 = vpack.c.b16 %v1011, %v1007
    %v1456 = vpack.c.b16 %v1012, %v1008
    %v1457 = vpack.c.b16 %v1013, %v1009
    %v1458 = vpack.c.b16 %v1018, %v1014
    %v1459 = vpack.c.b16 %v1019, %v1015
    %v1460 = vpack.c.b16 %v1020, %v1016
    %v1461 = vpack.c.b16 %v1021, %v1017
    %v1462 = vpack.c.b16 %v1026, %v1022
    %v1463 = vpack.c.b16 %v1027, %v1023
    %v1464 = vpack.c.b16 %v1028, %v1024
    %v1465 = vpack.c.b16 %v1029, %v1025
    %v1466 = vpack.c.b16 %v1034, %v1030
    %v1467 = vpack.c.b16 %v1035, %v1031
    %v1468 = vpack.c.b16 %v1036, %v1032
    %v1469 = vpack.c.b16 %v1037, %v1033
    %v1470 = vpack.c.b16 %v1042, %v1038
    %v1471 = vpack.c.b16 %v1043, %v1039
    %v1472 = vpack.c.b16 %v1044, %v1040
    %v1473 = vpack.c.b16 %v1045, %v1041
    %v1474 = vpack.c.b16 %v1050, %v1046
    %v1475 = vpack.c.b16 %v1051, %v1047
    %v1476 = vpack.c.b16 %v1052, %v1048
    %v1477 = vpack.c.b16 %v1053, %v1049
    %v1478 = vpack.c.b16 %v1058, %v1054
    %v1479 = vpack.c.b16 %v1059, %v1055
    %v1480 = vpack.c.b16 %v1060, %v1056
    %v1481 = vpack.c.b16 %v1061, %v1057
    %v1482 = vpack.c.b16 %v1066, %v1062
    %v1483 = vpack.c.b16 %v1067, %v1063
    %v1484 = vpack.c.b16 %v1068, %v1064
    %v1485 = vpack.c.b16 %v1069, %v1065
    %v1486 = vpack.c.b16 %v1074, %v1070
    %v1487 = vpack.c.b16 %v1075, %v1071
    %v1488 = vpack.c.b16 %v1076, %v1072
    %v1489 = vpack.c.b16 %v1077, %v1073
    %v1490 = vpack.c.b16 %v1082, %v1078
    %v1491 = vpack.c.b16 %v1083, %v1079
    %v1492 = vpack.c.b16 %v1084, %v1080
    %v1493 = vpack.c.b16 %v1085, %v1081
    %v1494 = vpack.c.b16 %v1090, %v1086
    %v1495 = vpack.c.b16 %v1091, %v1087
    %v1496 = vpack.c.b16 %v1092, %v1088
    %v1497 = vpack.c.b16 %v1093, %v1089
    %v1498 = vpack.c.b16 %v1098, %v1094
    %v1499 = vpack.c.b16 %v1099, %v1095
    %v1500 = vpack.c.b16 %v1100, %v1096
    %v1501 = vpack.c.b16 %v1101, %v1097
    %v1502 = vpack.c.b16 %v1106, %v1102
    %v1503 = vpack.c.b16 %v1107, %v1103
    %v1504 = vpack.c.b16 %v1108, %v1104
    %v1505 = vpack.c.b16 %v1109, %v1105
    %v1506 = vpack.c.b16 %v1114, %v1110
    %v1507 = vpack.c.b16 %v1115, %v1111
    %v1508 = vpack.c.b16 %v1116, %v1112
    %v1509 = vpack.c.b16 %v1117, %v1113
    %v1510 = vpack.c.b16 %v1122, %v1118
    %v1511 = vpack.c.b16 %v1123, %v1119
    %v1512 = vpack.c.b16 %v1124, %v1120
    %v1513 = vpack.c.b16 %v1125, %v1121
    %v1514 = vpack.c.b16 %v1130, %v1126
    %v1515 = vpack.c.b16 %v1131, %v1127
    %v1516 = vpack.c.b16 %v1132, %v1128
    %v1517 = vpack.c.b16 %v1133, %v1129
    %v1518 = vpack.c.b16 %v1138, %v1134
    %v1519 = vpack.c.b16 %v1139, %v1135
    %v1520 = vpack.c.b16 %v1140, %v1136
    %v1521 = vpack.c.b16 %v1141, %v1137
    %v1522 = vpack.c.b16 %v1146, %v1142
    %v1523 = vpack.c.b16 %v1147, %v1143
    %v1524 = vpack.c.b16 %v1148, %v1144
    %v1525 = vpack.c.b16 %v1149, %v1145
    %v1526 = vpack.c.b16 %v1154, %v1150
    %v1527 = vpack.c.b16 %v1155, %v1151
    %v1528 = vpack.c.b16 %v1156, %v1152
    %v1529 = vpack.c.b16 %v1157, %v1153
    %v1530 = vpack.c.b16 %v1162, %v1158
    %v1531 = vpack.c.b16 %v1163, %v1159
    %v1532 = vpack.c.b16 %v1164, %v1160
    %v1533 = vpack.c.b16 %v1165, %v1161
    %v1534 = vpack.c.b16 %v1170, %v1166
    %v1535 = vpack.c.b16 %v1171, %v1167
    %v1536 = vpack.c.b16 %v1172, %v1168
    %v1537 = vpack.c.b16 %v1173, %v1169
    %v1538 = vpack.c.b16 %v1178, %v1174
    %v1539 = vpack.c.b16 %v1179, %v1175
    %v1540 = vpack.c.b16 %v1180, %v1176
    %v1541 = vpack.c.b16 %v1181, %v1177
    %v1542 = vpack.c.b16 %v1186, %v1182
    %v1543 = vpack.c.b16 %v1187, %v1183
    %v1544 = vpack.c.b16 %v1188, %v1184
    %v1545 = vpack.c.b16 %v1189, %v1185
    %v1546 = vpack.c.b16 %v1194, %v1190
    %v1547 = vpack.c.b16 %v1195, %v1191
    %v1548 = vpack.c.b16 %v1196, %v1192
    %v1549 = vpack.c.b16 %v1197, %v1193
    %v1550 = vpack.c.b16 %v1202, %v1198
    %v1551 = vpack.c.b16 %v1203, %v1199
    %v1552 = vpack.c.b16 %v1204, %v1200
    %v1553 = vpack.c.b16 %v1205, %v1201
    %v1554 = vpack.c.b16 %v1210, %v1206
    %v1555 = vpack.c.b16 %v1211, %v1207
    %v1556 = vpack.c.b16 %v1212, %v1208
    %v1557 = vpack.c.b16 %v1213, %v1209
    %v1558 = vpack.c.b16 %v1218, %v1214
    %v1559 = vpack.c.b16 %v1219, %v1215
    %v1560 = vpack.c.b16 %v1220, %v1216
    %v1561 = vpack.c.b16 %v1221, %v1217
    %v1562 = vpack.c.b16 %v1226, %v1222
    %v1563 = vpack.c.b16 %v1227, %v1223
    %v1564 = vpack.c.b16 %v1228, %v1224
    %v1565 = vpack.c.b16 %v1229, %v1225
    %v1566 = vpack.c.b16 %v1234, %v1230
    %v1567 = vpack.c.b16 %v1235, %v1231
    %v1568 = vpack.c.b16 %v1236, %v1232
    %v1569 = vpack.c.b16 %v1237, %v1233
    %v1570 = vpack.c.b16 %v1242, %v1238
    %v1571 = vpack.c.b16 %v1243, %v1239
    %v1572 = vpack.c.b16 %v1244, %v1240
    %v1573 = vpack.c.b16 %v1245, %v1241
    %v1574 = vpack.c.b16 %v1250, %v1246
    %v1575 = vpack.c.b16 %v1251, %v1247
    %v1576 = vpack.c.b16 %v1252, %v1248
    %v1577 = vpack.c.b16 %v1253, %v1249
    %v1578 = vpack.c.b16 %v1258, %v1254
    %v1579 = vpack.c.b16 %v1259, %v1255
    %v1580 = vpack.c.b16 %v1260, %v1256
    %v1581 = vpack.c.b16 %v1261, %v1257
    %v1582 = vpack.c.b16 %v1266, %v1262
    %v1583 = vpack.c.b16 %v1267, %v1263
    %v1584 = vpack.c.b16 %v1268, %v1264
    %v1585 = vpack.c.b16 %v1269, %v1265
    %v1586 = vpack.c.b16 %v1274, %v1270
    %v1587 = vpack.c.b16 %v1275, %v1271
    %v1588 = vpack.c.b16 %v1276, %v1272
    %v1589 = vpack.c.b16 %v1277, %v1273
    %v1590 = vpack.c.b16 %v1282, %v1278
    %v1591 = vpack.c.b16 %v1283, %v1279
    %v1592 = vpack.c.b16 %v1284, %v1280
    %v1593 = vpack.c.b16 %v1285, %v1281
    %v1594 = vpack.c.b16 %v1290, %v1286
    %v1595 = vpack.c.b16 %v1291, %v1287
    %v1596 = vpack.c.b16 %v1292, %v1288
    %v1597 = vpack.c.b16 %v1293, %v1289
    %v1598 = vpack.c.b16 %v1298, %v1294
    %v1599 = vpack.c.b16 %v1299, %v1295
    %v1600 = vpack.c.b16 %v1300, %v1296
    %v1601 = vpack.c.b16 %v1301, %v1297
    %v1602 = vpack.c.b16 %v1306, %v1302
    %v1603 = vpack.c.b16 %v1307, %v1303
    %v1604 = vpack.c.b16 %v1308, %v1304
    %v1605 = vpack.c.b16 %v1309, %v1305
    %v1606 = vpack.c.b16 %v1314, %v1310
    %v1607 = vpack.c.b16 %v1315, %v1311
    %v1608 = vpack.c.b16 %v1316, %v1312
    %v1609 = vpack.c.b16 %v1317, %v1313
    %v1610 = vpack.c.b16 %v1322, %v1318
    %v1611 = vpack.c.b16 %v1323, %v1319
    %v1612 = vpack.c.b16 %v1324, %v1320
    %v1613 = vpack.c.b16 %v1325, %v1321
    %1902 = vmatprep.subr.bf16.mxu0 %v1355
    %1903 = vmatpush1.bf16.msra.mxu0 %v1354
    %1904 = vmatprep.subr.bf16.mxu0 %v1351
    %1905 = vmatpush1.bf16.msra.mxu0 %v1350
    %1906 = vmatprep.subr.bf16.mxu0 %v1347
    %1907 = vmatpush1.bf16.msra.mxu0 %v1346
    %1908 = vmatprep.subr.bf16.mxu0 %v1343
    %1909 = vmatpush1.bf16.msra.mxu0 %v1342
    %1910 = vmatprep.subr.bf16.mxu0 %v1339
    %1911 = vmatpush1.bf16.msra.mxu0 %v1338
    %1912 = vmatprep.subr.bf16.mxu0 %v1335
    %1913 = vmatpush1.bf16.msra.mxu0 %v1334
    %1914 = vmatprep.subr.bf16.mxu0 %v1331
    %1915 = vmatpush1.bf16.msra.mxu0 %v1330
    %1916 = vmatprep.subr.bf16.mxu0 %v1327
    %1917 = vmatpush1.bf16.msra.mxu0 %v1326
    %1918 = vmatprep.subr.bf16.mxu0 %v1387
    %1919 = vmatpush2.bf16.msra.mxu0 %v1386
    %1920 = vmatprep.subr.bf16.mxu0 %v1383
    %1921 = vmatpush2.bf16.msra.mxu0 %v1382
    %1922 = vmatprep.subr.bf16.mxu0 %v1379
    %1923 = vmatpush2.bf16.msra.mxu0 %v1378
    %1924 = vmatprep.subr.bf16.mxu0 %v1375
    %1925 = vmatpush2.bf16.msra.mxu0 %v1374
    %1926 = vmatprep.subr.bf16.mxu0 %v1371
    %1927 = vmatpush2.bf16.msra.mxu0 %v1370
    %1928 = vmatprep.subr.bf16.mxu0 %v1367
    %1929 = vmatpush2.bf16.msra.mxu0 %v1366
    %1930 = vmatprep.subr.bf16.mxu0 %v1363
    %1931 = vmatpush2.bf16.msra.mxu0 %v1362
    %1932 = vmatprep.subr.bf16.mxu0 %v1359
    %1933 = vmatpush2.bf16.msra.mxu0 %v1358
    %1934 = vmatprep.mubr.bf16.mxu0 %v445
    %1935 = vmatmul.mubr.bf16.gmra.mxu0 %v444
    %v1936 = vpop.f32.mrf.mxu0
    %v1937 = vadd.f32 %v413, %v1936
    %v1938 = vpop.f32.mrf.mxu0
    %v1939 = vadd.f32 %v417, %v1938
    %v1940 = vpop.f32.mrf.mxu0
    %v1941 = vpop.f32.mrf.mxu0
    %1942 = vdwg.mxu0
    %1943 = vmatprep.subr.bf16.mxu0 %v1419
    %1944 = vmatpush1.bf16.msra.mxu0 %v1418
    %1945 = vmatprep.subr.bf16.mxu0 %v1415
    %1946 = vmatpush1.bf16.msra.mxu0 %v1414
    %1947 = vmatprep.subr.bf16.mxu0 %v1411
    %1948 = vmatpush1.bf16.msra.mxu0 %v1410
    %1949 = vmatprep.subr.bf16.mxu0 %v1407
    %1950 = vmatpush1.bf16.msra.mxu0 %v1406
    %1951 = vmatprep.subr.bf16.mxu0 %v1403
    %1952 = vmatpush1.bf16.msra.mxu0 %v1402
    %1953 = vmatprep.subr.bf16.mxu0 %v1399
    %1954 = vmatpush1.bf16.msra.mxu0 %v1398
    %1955 = vmatprep.subr.bf16.mxu0 %v1395
    %1956 = vmatpush1.bf16.msra.mxu0 %v1394
    %1957 = vmatprep.subr.bf16.mxu0 %v1391
    %1958 = vmatpush1.bf16.msra.mxu0 %v1390
    %1959 = vmatprep.subr.bf16.mxu0 %v1451
    %1960 = vmatpush2.bf16.msra.mxu0 %v1450
    %1961 = vmatprep.subr.bf16.mxu0 %v1447
    %1962 = vmatpush2.bf16.msra.mxu0 %v1446
    %1963 = vmatprep.subr.bf16.mxu0 %v1443
    %1964 = vmatpush2.bf16.msra.mxu0 %v1442
    %1965 = vmatprep.subr.bf16.mxu0 %v1439
    %1966 = vmatpush2.bf16.msra.mxu0 %v1438
    %1967 = vmatprep.subr.bf16.mxu0 %v1435
    %1968 = vmatpush2.bf16.msra.mxu0 %v1434
    %1969 = vmatprep.subr.bf16.mxu0 %v1431
    %1970 = vmatpush2.bf16.msra.mxu0 %v1430
    %1971 = vmatprep.subr.bf16.mxu0 %v1427
    %1972 = vmatpush2.bf16.msra.mxu0 %v1426
    %1973 = vmatprep.subr.bf16.mxu0 %v1423
    %1974 = vmatpush2.bf16.msra.mxu0 %v1422
    %1975 = vmatprep.mubr.bf16.mxu0 %v447
    %1976 = vmatmul.mubr.bf16.gmra.mxu0 %v446
    %v1977 = vpop.f32.mrf.mxu0
    %v1978 = vadd.f32 %v1937, %v1977
    %v1979 = vpop.f32.mrf.mxu0
    %v1980 = vadd.f32 %v1939, %v1979
    %v1981 = vpop.f32.mrf.mxu0
    %v1982 = vpop.f32.mrf.mxu0
    %1983 = vdwg.mxu0
    %1984 = vmatprep.subr.bf16.mxu0 %v1483
    %1985 = vmatpush1.bf16.msra.mxu0 %v1482
    %1986 = vmatprep.subr.bf16.mxu0 %v1479
    %1987 = vmatpush1.bf16.msra.mxu0 %v1478
    %1988 = vmatprep.subr.bf16.mxu0 %v1475
    %1989 = vmatpush1.bf16.msra.mxu0 %v1474
    %1990 = vmatprep.subr.bf16.mxu0 %v1471
    %1991 = vmatpush1.bf16.msra.mxu0 %v1470
    %1992 = vmatprep.subr.bf16.mxu0 %v1467
    %1993 = vmatpush1.bf16.msra.mxu0 %v1466
    %1994 = vmatprep.subr.bf16.mxu0 %v1463
    %1995 = vmatpush1.bf16.msra.mxu0 %v1462
    %1996 = vmatprep.subr.bf16.mxu0 %v1459
    %1997 = vmatpush1.bf16.msra.mxu0 %v1458
    %1998 = vmatprep.subr.bf16.mxu0 %v1455
    %1999 = vmatpush1.bf16.msra.mxu0 %v1454
    %2000 = vmatprep.subr.bf16.mxu0 %v1515
    %2001 = vmatpush2.bf16.msra.mxu0 %v1514
    %2002 = vmatprep.subr.bf16.mxu0 %v1511
    %2003 = vmatpush2.bf16.msra.mxu0 %v1510
    %2004 = vmatprep.subr.bf16.mxu0 %v1507
    %2005 = vmatpush2.bf16.msra.mxu0 %v1506
    %2006 = vmatprep.subr.bf16.mxu0 %v1503
    %2007 = vmatpush2.bf16.msra.mxu0 %v1502
    %2008 = vmatprep.subr.bf16.mxu0 %v1499
    %2009 = vmatpush2.bf16.msra.mxu0 %v1498
    %2010 = vmatprep.subr.bf16.mxu0 %v1495
    %2011 = vmatpush2.bf16.msra.mxu0 %v1494
    %2012 = vmatprep.subr.bf16.mxu0 %v1491
    %2013 = vmatpush2.bf16.msra.mxu0 %v1490
    %2014 = vmatprep.subr.bf16.mxu0 %v1487
    %2015 = vmatpush2.bf16.msra.mxu0 %v1486
    %2016 = vmatprep.mubr.bf16.mxu0 %v449
    %2017 = vmatmul.mubr.bf16.gmra.mxu0 %v448
    %v2018 = vpop.f32.mrf.mxu0
    %v2019 = vadd.f32 %v1978, %v2018
    %v2020 = vpop.f32.mrf.mxu0
    %v2021 = vadd.f32 %v1980, %v2020
    %v2022 = vpop.f32.mrf.mxu0
    %v2023 = vpop.f32.mrf.mxu0
    %2024 = vdwg.mxu0
    %2025 = vmatprep.subr.bf16.mxu0 %v1547
    %2026 = vmatpush1.bf16.msra.mxu0 %v1546
    %2027 = vmatprep.subr.bf16.mxu0 %v1543
    %2028 = vmatpush1.bf16.msra.mxu0 %v1542
    %2029 = vmatprep.subr.bf16.mxu0 %v1539
    %2030 = vmatpush1.bf16.msra.mxu0 %v1538
    %2031 = vmatprep.subr.bf16.mxu0 %v1535
    %2032 = vmatpush1.bf16.msra.mxu0 %v1534
    %2033 = vmatprep.subr.bf16.mxu0 %v1531
    %2034 = vmatpush1.bf16.msra.mxu0 %v1530
    %2035 = vmatprep.subr.bf16.mxu0 %v1527
    %2036 = vmatpush1.bf16.msra.mxu0 %v1526
    %2037 = vmatprep.subr.bf16.mxu0 %v1523
    %2038 = vmatpush1.bf16.msra.mxu0 %v1522
    %2039 = vmatprep.subr.bf16.mxu0 %v1519
    %2040 = vmatpush1.bf16.msra.mxu0 %v1518
    %2041 = vmatprep.subr.bf16.mxu0 %v1579
    %2042 = vmatpush2.bf16.msra.mxu0 %v1578
    %2043 = vmatprep.subr.bf16.mxu0 %v1575
    %2044 = vmatpush2.bf16.msra.mxu0 %v1574
    %2045 = vmatprep.subr.bf16.mxu0 %v1571
    %2046 = vmatpush2.bf16.msra.mxu0 %v1570
    %2047 = vmatprep.subr.bf16.mxu0 %v1567
    %2048 = vmatpush2.bf16.msra.mxu0 %v1566
    %2049 = vmatprep.subr.bf16.mxu0 %v1563
    %2050 = vmatpush2.bf16.msra.mxu0 %v1562
    %2051 = vmatprep.subr.bf16.mxu0 %v1559
    %2052 = vmatpush2.bf16.msra.mxu0 %v1558
    %2053 = vmatprep.subr.bf16.mxu0 %v1555
    %2054 = vmatpush2.bf16.msra.mxu0 %v1554
    %2055 = vmatprep.subr.bf16.mxu0 %v1551
    %2056 = vmatpush2.bf16.msra.mxu0 %v1550
    %2057 = vmatprep.mubr.bf16.mxu0 %v451
    %2058 = vmatmul.mubr.bf16.gmra.mxu0 %v450
    %v2059 = vpop.f32.mrf.mxu0
    %v2060 = vadd.f32 %v2019, %v2059
    %v2061 = vpop.f32.mrf.mxu0
    %v2062 = vadd.f32 %v2021, %v2061
    %v2063 = vpop.f32.mrf.mxu0
    %v2064 = vpop.f32.mrf.mxu0
    %2065 = vdwg.mxu0
    %2066 = vmatprep.subr.bf16.mxu0 %v1611
    %2067 = vmatpush1.bf16.msra.mxu0 %v1610
    %2068 = vmatprep.subr.bf16.mxu0 %v1607
    %2069 = vmatpush1.bf16.msra.mxu0 %v1606
    %2070 = vmatprep.subr.bf16.mxu0 %v1603
    %2071 = vmatpush1.bf16.msra.mxu0 %v1602
    %2072 = vmatprep.subr.bf16.mxu0 %v1599
    %2073 = vmatpush1.bf16.msra.mxu0 %v1598
    %2074 = vmatprep.subr.bf16.mxu0 %v1595
    %2075 = vmatpush1.bf16.msra.mxu0 %v1594
    %2076 = vmatprep.subr.bf16.mxu0 %v1591
    %2077 = vmatpush1.bf16.msra.mxu0 %v1590
    %2078 = vmatprep.subr.bf16.mxu0 %v1587
    %2079 = vmatpush1.bf16.msra.mxu0 %v1586
    %2080 = vmatprep.subr.bf16.mxu0 %v1583
    %2081 = vmatpush1.bf16.msra.mxu0 %v1582
    %2082 = vmatprep.subr.bf16.mxu0 0
    %2083 = vmatpush2.bf16.msra.mxu0 0
    %2084 = vmatprep.subr.bf16.mxu0 0
    %2085 = vmatpush2.bf16.msra.mxu0 0
    %2086 = vmatprep.subr.bf16.mxu0 0
    %2087 = vmatpush2.bf16.msra.mxu0 0
    %2088 = vmatprep.subr.bf16.mxu0 0
    %2089 = vmatpush2.bf16.msra.mxu0 0
    %2090 = vmatprep.subr.bf16.mxu0 0
    %2091 = vmatpush2.bf16.msra.mxu0 0
    %2092 = vmatprep.subr.bf16.mxu0 0
    %2093 = vmatpush2.bf16.msra.mxu0 0
    %2094 = vmatprep.subr.bf16.mxu0 0
    %2095 = vmatpush2.bf16.msra.mxu0 0
    %2096 = vmatprep.subr.bf16.mxu0 0
    %2097 = vmatpush2.bf16.msra.mxu0 0
    %2098 = vmatprep.mubr.bf16.mxu0 0
    %2099 = vmatmul.mubr.bf16.gmra.mxu0 %v452
    %v2100 = vpop.f32.mrf.mxu0
    %v2101 = vadd.f32 %v2060, %v2100
    %v2102 = vpop.f32.mrf.mxu0
    %v2103 = vadd.f32 %v2062, %v2102
    %v2104 = vpop.f32.mrf.mxu0
    %v2105 = vpop.f32.mrf.mxu0
    %2106 = vdwg.mxu0
    %2107 = vmatprep.subr.bf16.mxu0 %v1357
    %2108 = vmatpush1.bf16.msra.mxu0 %v1356
    %2109 = vmatprep.subr.bf16.mxu0 %v1353
    %2110 = vmatpush1.bf16.msra.mxu0 %v1352
    %2111 = vmatprep.subr.bf16.mxu0 %v1349
    %2112 = vmatpush1.bf16.msra.mxu0 %v1348
    %2113 = vmatprep.subr.bf16.mxu0 %v1345
    %2114 = vmatpush1.bf16.msra.mxu0 %v1344
    %2115 = vmatprep.subr.bf16.mxu0 %v1341
    %2116 = vmatpush1.bf16.msra.mxu0 %v1340
    %2117 = vmatprep.subr.bf16.mxu0 %v1337
    %2118 = vmatpush1.bf16.msra.mxu0 %v1336
    %2119 = vmatprep.subr.bf16.mxu0 %v1333
    %2120 = vmatpush1.bf16.msra.mxu0 %v1332
    %2121 = vmatprep.subr.bf16.mxu0 %v1329
    %2122 = vmatpush1.bf16.msra.mxu0 %v1328
    %2123 = vmatprep.subr.bf16.mxu0 %v1389
    %2124 = vmatpush2.bf16.msra.mxu0 %v1388
    %2125 = vmatprep.subr.bf16.mxu0 %v1385
    %2126 = vmatpush2.bf16.msra.mxu0 %v1384
    %2127 = vmatprep.subr.bf16.mxu0 %v1381
    %2128 = vmatpush2.bf16.msra.mxu0 %v1380
    %2129 = vmatprep.subr.bf16.mxu0 %v1377
    %2130 = vmatpush2.bf16.msra.mxu0 %v1376
    %2131 = vmatprep.subr.bf16.mxu0 %v1373
    %2132 = vmatpush2.bf16.msra.mxu0 %v1372
    %2133 = vmatprep.subr.bf16.mxu0 %v1369
    %2134 = vmatpush2.bf16.msra.mxu0 %v1368
    %2135 = vmatprep.subr.bf16.mxu0 %v1365
    %2136 = vmatpush2.bf16.msra.mxu0 %v1364
    %2137 = vmatprep.subr.bf16.mxu0 %v1361
    %2138 = vmatpush2.bf16.msra.mxu0 %v1360
    %2139 = vmatprep.mubr.bf16.mxu0 %v445
    %2140 = vmatmul.mubr.bf16.gmra.mxu0 %v444
    %v2141 = vpop.f32.mrf.mxu0
    %v2142 = vadd.f32 %v421, %v2141
    %v2143 = vpop.f32.mrf.mxu0
    %v2144 = vadd.f32 %v425, %v2143
    %v2145 = vpop.f32.mrf.mxu0
    %v2146 = vpop.f32.mrf.mxu0
    %2147 = vdwg.mxu0
    %2148 = vmatprep.subr.bf16.mxu0 %v1421
    %2149 = vmatpush1.bf16.msra.mxu0 %v1420
    %2150 = vmatprep.subr.bf16.mxu0 %v1417
    %2151 = vmatpush1.bf16.msra.mxu0 %v1416
    %2152 = vmatprep.subr.bf16.mxu0 %v1413
    %2153 = vmatpush1.bf16.msra.mxu0 %v1412
    %2154 = vmatprep.subr.bf16.mxu0 %v1409
    %2155 = vmatpush1.bf16.msra.mxu0 %v1408
    %2156 = vmatprep.subr.bf16.mxu0 %v1405
    %2157 = vmatpush1.bf16.msra.mxu0 %v1404
    %2158 = vmatprep.subr.bf16.mxu0 %v1401
    %2159 = vmatpush1.bf16.msra.mxu0 %v1400
    %2160 = vmatprep.subr.bf16.mxu0 %v1397
    %2161 = vmatpush1.bf16.msra.mxu0 %v1396
    %2162 = vmatprep.subr.bf16.mxu0 %v1393
    %2163 = vmatpush1.bf16.msra.mxu0 %v1392
    %2164 = vmatprep.subr.bf16.mxu0 %v1453
    %2165 = vmatpush2.bf16.msra.mxu0 %v1452
    %2166 = vmatprep.subr.bf16.mxu0 %v1449
    %2167 = vmatpush2.bf16.msra.mxu0 %v1448
    %2168 = vmatprep.subr.bf16.mxu0 %v1445
    %2169 = vmatpush2.bf16.msra.mxu0 %v1444
    %2170 = vmatprep.subr.bf16.mxu0 %v1441
    %2171 = vmatpush2.bf16.msra.mxu0 %v1440
    %2172 = vmatprep.subr.bf16.mxu0 %v1437
    %2173 = vmatpush2.bf16.msra.mxu0 %v1436
    %2174 = vmatprep.subr.bf16.mxu0 %v1433
    %2175 = vmatpush2.bf16.msra.mxu0 %v1432
    %2176 = vmatprep.subr.bf16.mxu0 %v1429
    %2177 = vmatpush2.bf16.msra.mxu0 %v1428
    %2178 = vmatprep.subr.bf16.mxu0 %v1425
    %2179 = vmatpush2.bf16.msra.mxu0 %v1424
    %2180 = vmatprep.mubr.bf16.mxu0 %v447
    %2181 = vmatmul.mubr.bf16.gmra.mxu0 %v446
    %v2182 = vpop.f32.mrf.mxu0
    %v2183 = vadd.f32 %v2142, %v2182
    %v2184 = vpop.f32.mrf.mxu0
    %v2185 = vadd.f32 %v2144, %v2184
    %v2186 = vpop.f32.mrf.mxu0
    %v2187 = vpop.f32.mrf.mxu0
    %2188 = vdwg.mxu0
    %2189 = vmatprep.subr.bf16.mxu0 %v1485
    %2190 = vmatpush1.bf16.msra.mxu0 %v1484
    %2191 = vmatprep.subr.bf16.mxu0 %v1481
    %2192 = vmatpush1.bf16.msra.mxu0 %v1480
    %2193 = vmatprep.subr.bf16.mxu0 %v1477
    %2194 = vmatpush1.bf16.msra.mxu0 %v1476
    %2195 = vmatprep.subr.bf16.mxu0 %v1473
    %2196 = vmatpush1.bf16.msra.mxu0 %v1472
    %2197 = vmatprep.subr.bf16.mxu0 %v1469
    %2198 = vmatpush1.bf16.msra.mxu0 %v1468
    %2199 = vmatprep.subr.bf16.mxu0 %v1465
    %2200 = vmatpush1.bf16.msra.mxu0 %v1464
    %2201 = vmatprep.subr.bf16.mxu0 %v1461
    %2202 = vmatpush1.bf16.msra.mxu0 %v1460
    %2203 = vmatprep.subr.bf16.mxu0 %v1457
    %2204 = vmatpush1.bf16.msra.mxu0 %v1456
    %2205 = vmatprep.subr.bf16.mxu0 %v1517
    %2206 = vmatpush2.bf16.msra.mxu0 %v1516
    %2207 = vmatprep.subr.bf16.mxu0 %v1513
    %2208 = vmatpush2.bf16.msra.mxu0 %v1512
    %2209 = vmatprep.subr.bf16.mxu0 %v1509
    %2210 = vmatpush2.bf16.msra.mxu0 %v1508
    %2211 = vmatprep.subr.bf16.mxu0 %v1505
    %2212 = vmatpush2.bf16.msra.mxu0 %v1504
    %2213 = vmatprep.subr.bf16.mxu0 %v1501
    %2214 = vmatpush2.bf16.msra.mxu0 %v1500
    %2215 = vmatprep.subr.bf16.mxu0 %v1497
    %2216 = vmatpush2.bf16.msra.mxu0 %v1496
    %2217 = vmatprep.subr.bf16.mxu0 %v1493
    %2218 = vmatpush2.bf16.msra.mxu0 %v1492
    %2219 = vmatprep.subr.bf16.mxu0 %v1489
    %2220 = vmatpush2.bf16.msra.mxu0 %v1488
    %2221 = vmatprep.mubr.bf16.mxu0 %v449
    %2222 = vmatmul.mubr.bf16.gmra.mxu0 %v448
    %v2223 = vpop.f32.mrf.mxu0
    %v2224 = vadd.f32 %v2183, %v2223
    %v2225 = vpop.f32.mrf.mxu0
    %v2226 = vadd.f32 %v2185, %v2225
    %v2227 = vpop.f32.mrf.mxu0
    %v2228 = vpop.f32.mrf.mxu0
    %2229 = vdwg.mxu0
    %2230 = vmatprep.subr.bf16.mxu0 %v1549
    %2231 = vmatpush1.bf16.msra.mxu0 %v1548
    %2232 = vmatprep.subr.bf16.mxu0 %v1545
    %2233 = vmatpush1.bf16.msra.mxu0 %v1544
    %2234 = vmatprep.subr.bf16.mxu0 %v1541
    %2235 = vmatpush1.bf16.msra.mxu0 %v1540
    %2236 = vmatprep.subr.bf16.mxu0 %v1537
    %2237 = vmatpush1.bf16.msra.mxu0 %v1536
    %2238 = vmatprep.subr.bf16.mxu0 %v1533
    %2239 = vmatpush1.bf16.msra.mxu0 %v1532
    %2240 = vmatprep.subr.bf16.mxu0 %v1529
    %2241 = vmatpush1.bf16.msra.mxu0 %v1528
    %2242 = vmatprep.subr.bf16.mxu0 %v1525
    %2243 = vmatpush1.bf16.msra.mxu0 %v1524
    %2244 = vmatprep.subr.bf16.mxu0 %v1521
    %2245 = vmatpush1.bf16.msra.mxu0 %v1520
    %2246 = vmatprep.subr.bf16.mxu0 %v1581
    %2247 = vmatpush2.bf16.msra.mxu0 %v1580
    %2248 = vmatprep.subr.bf16.mxu0 %v1577
    %2249 = vmatpush2.bf16.msra.mxu0 %v1576
    %2250 = vmatprep.subr.bf16.mxu0 %v1573
    %2251 = vmatpush2.bf16.msra.mxu0 %v1572
    %2252 = vmatprep.subr.bf16.mxu0 %v1569
    %2253 = vmatpush2.bf16.msra.mxu0 %v1568
    %2254 = vmatprep.subr.bf16.mxu0 %v1565
    %2255 = vmatpush2.bf16.msra.mxu0 %v1564
    %2256 = vmatprep.subr.bf16.mxu0 %v1561
    %2257 = vmatpush2.bf16.msra.mxu0 %v1560
    %2258 = vmatprep.subr.bf16.mxu0 %v1557
    %2259 = vmatpush2.bf16.msra.mxu0 %v1556
    %2260 = vmatprep.subr.bf16.mxu0 %v1553
    %2261 = vmatpush2.bf16.msra.mxu0 %v1552
    %2262 = vmatprep.mubr.bf16.mxu0 %v451
    %2263 = vmatmul.mubr.bf16.gmra.mxu0 %v450
    %v2264 = vpop.f32.mrf.mxu0
    %v2265 = vadd.f32 %v2224, %v2264
    %v2266 = vpop.f32.mrf.mxu0
    %v2267 = vadd.f32 %v2226, %v2266
    %v2268 = vpop.f32.mrf.mxu0
    %v2269 = vpop.f32.mrf.mxu0
    %2270 = vdwg.mxu0
    %2271 = vmatprep.subr.bf16.mxu0 %v1613
    %2272 = vmatpush1.bf16.msra.mxu0 %v1612
    %2273 = vmatprep.subr.bf16.mxu0 %v1609
    %2274 = vmatpush1.bf16.msra.mxu0 %v1608
    %2275 = vmatprep.subr.bf16.mxu0 %v1605
    %2276 = vmatpush1.bf16.msra.mxu0 %v1604
    %2277 = vmatprep.subr.bf16.mxu0 %v1601
    %2278 = vmatpush1.bf16.msra.mxu0 %v1600
    %2279 = vmatprep.subr.bf16.mxu0 %v1597
    %2280 = vmatpush1.bf16.msra.mxu0 %v1596
    %2281 = vmatprep.subr.bf16.mxu0 %v1593
    %2282 = vmatpush1.bf16.msra.mxu0 %v1592
    %2283 = vmatprep.subr.bf16.mxu0 %v1589
    %2284 = vmatpush1.bf16.msra.mxu0 %v1588
    %2285 = vmatprep.subr.bf16.mxu0 %v1585
    %2286 = vmatpush1.bf16.msra.mxu0 %v1584
    %2287 = vmatprep.subr.bf16.mxu0 0
    %2288 = vmatpush2.bf16.msra.mxu0 0
    %2289 = vmatprep.subr.bf16.mxu0 0
    %2290 = vmatpush2.bf16.msra.mxu0 0
    %2291 = vmatprep.subr.bf16.mxu0 0
    %2292 = vmatpush2.bf16.msra.mxu0 0
    %2293 = vmatprep.subr.bf16.mxu0 0
    %2294 = vmatpush2.bf16.msra.mxu0 0
    %2295 = vmatprep.subr.bf16.mxu0 0
    %2296 = vmatpush2.bf16.msra.mxu0 0
    %2297 = vmatprep.subr.bf16.mxu0 0
    %2298 = vmatpush2.bf16.msra.mxu0 0
    %2299 = vmatprep.subr.bf16.mxu0 0
    %2300 = vmatpush2.bf16.msra.mxu0 0
    %2301 = vmatprep.subr.bf16.mxu0 0
    %2302 = vmatpush2.bf16.msra.mxu0 0
    %2303 = vmatprep.mubr.bf16.mxu0 0
    %2304 = vmatmul.mubr.bf16.gmra.mxu0 %v452
    %v2305 = vpop.f32.mrf.mxu0
    %v2306 = vadd.f32 %v2265, %v2305
    %v2307 = vpop.f32.mrf.mxu0
    %v2308 = vadd.f32 %v2267, %v2307
    %v2309 = vpop.f32.mrf.mxu0
    %v2310 = vpop.f32.mrf.mxu0
    %2311 = vdwg.mxu0
    %v2312 = vmul.f32 %v2101, 0.2
    %v2313 = vmul.f32 %v2103, 0.2
    %v2314 = vmul.f32 %v2306, 0.2
    %v2315 = vmul.f32 %v2308, 0.2
    %v2316 = vmax.f32 %v2101, %v2312
    %v2317 = vmax.f32 %v2103, %v2313
    %v2318 = vmax.f32 %v2306, %v2314
    %v2319 = vmax.f32 %v2308, %v2315
    %v2320 = vpack.c.bf16 %v2316, %v2316
    %v2321 = vpack.c.bf16 %v2317, %v2317
    %v2322 = vpack.c.bf16 %v2318, %v2318
    %v2323 = vpack.c.bf16 %v2319, %v2319
    %v2324 = vld [vmem:[#allocation8] sm:$0xff]
    %v2325 = vld [vmem:[#allocation8 + $0x8] sm:$0xff]
    %v2326 = vld [vmem:[#allocation8 + $0x10] sm:$0xff]
    %v2327 = vld [vmem:[#allocation8 + $0x18] sm:$0xff]
    %v2328 = vld [vmem:[#allocation8 + $0x20] sm:$0xff]
    %v2329 = vld [vmem:[#allocation8 + $0x28] sm:$0xff]
    %v2330 = vld [vmem:[#allocation8 + $0x30] sm:$0xff]
    %v2331 = vld [vmem:[#allocation8 + $0x38] sm:$0xff]
    %v2332 = vld [vmem:[#allocation8 + $0x40] sm:$0xff]
    %v2333 = vld [vmem:[#allocation8 + $0x48] sm:$0xff]
    %v2334 = vld [vmem:[#allocation8 + $0x50] sm:$0xff]
    %v2335 = vld [vmem:[#allocation8 + $0x58] sm:$0xff]
    %v2336 = vld [vmem:[#allocation8 + $0x60] sm:$0xff]
    %v2337 = vld [vmem:[#allocation8 + $0x68] sm:$0xff]
    %v2338 = vld [vmem:[#allocation8 + $0x70] sm:$0xff]
    %v2339 = vld [vmem:[#allocation8 + $0x78] sm:$0xff]
    %v2340 = vld [vmem:[#allocation8 + $0x80] sm:$0xff]
    %v2341 = vld [vmem:[#allocation8 + $0x88] sm:$0xff]
    %v2342 = vld [vmem:[#allocation8 + $0x90] sm:$0xff]
    %v2343 = vld [vmem:[#allocation8 + $0x98] sm:$0xff]
    %v2344 = vld [vmem:[#allocation8 + $0xa0] sm:$0xff]
    %v2345 = vld [vmem:[#allocation8 + $0xa8] sm:$0xff]
    %v2346 = vld [vmem:[#allocation8 + $0xb0] sm:$0xff]
    %v2347 = vld [vmem:[#allocation8 + $0xb8] sm:$0xff]
    %v2348 = vld [vmem:[#allocation8 + $0xc0] sm:$0xff]
    %v2349 = vld [vmem:[#allocation8 + $0xc8] sm:$0xff]
    %v2350 = vld [vmem:[#allocation8 + $0xd0] sm:$0xff]
    %v2351 = vld [vmem:[#allocation8 + $0xd8] sm:$0xff]
    %v2352 = vld [vmem:[#allocation8 + $0xe0] sm:$0xff]
    %v2353 = vld [vmem:[#allocation8 + $0xe8] sm:$0xff]
    %v2354 = vld [vmem:[#allocation8 + $0xf0] sm:$0xff]
    %v2355 = vld [vmem:[#allocation8 + $0xf8] sm:$0xff]
    %v2356 = vld [vmem:[#allocation8 + $0x100] sm:$0xff]
    %v2357 = vld [vmem:[#allocation8 + $0x108] sm:$0xff]
    %v2358 = vld [vmem:[#allocation8 + $0x110] sm:$0xff]
    %v2359 = vld [vmem:[#allocation8 + $0x118] sm:$0xff]
    %v2360 = vld [vmem:[#allocation8 + $0x120] sm:$0xff]
    %v2361 = vld [vmem:[#allocation8 + $0x128] sm:$0xff]
    %v2362 = vld [vmem:[#allocation8 + $0x130] sm:$0xff]
    %v2363 = vld [vmem:[#allocation8 + $0x138] sm:$0xff]
    %v2364 = vld [vmem:[#allocation8 + $0x140] sm:$0xff]
    %v2365 = vld [vmem:[#allocation8 + $0x148] sm:$0xff]
    %v2366 = vld [vmem:[#allocation8 + $0x150] sm:$0xff]
    %v2367 = vld [vmem:[#allocation8 + $0x158] sm:$0xff]
    %v2368 = vld [vmem:[#allocation8 + $0x160] sm:$0xff]
    %v2369 = vld [vmem:[#allocation8 + $0x168] sm:$0xff]
    %v2370 = vld [vmem:[#allocation8 + $0x170] sm:$0xff]
    %v2371 = vld [vmem:[#allocation8 + $0x178] sm:$0xff]
    %v2372 = vld [vmem:[#allocation8 + $0x180] sm:$0xff]
    %v2373 = vld [vmem:[#allocation8 + $0x188] sm:$0xff]
    %v2374 = vld [vmem:[#allocation8 + $0x190] sm:$0xff]
    %v2375 = vld [vmem:[#allocation8 + $0x198] sm:$0xff]
    %v2376 = vld [vmem:[#allocation8 + $0x1a0] sm:$0xff]
    %v2377 = vld [vmem:[#allocation8 + $0x1a8] sm:$0xff]
    %v2378 = vld [vmem:[#allocation8 + $0x1b0] sm:$0xff]
    %v2379 = vld [vmem:[#allocation8 + $0x1b8] sm:$0xff]
    %v2380 = vld [vmem:[#allocation8 + $0x1c0] sm:$0xff]
    %v2381 = vld [vmem:[#allocation8 + $0x1c8] sm:$0xff]
    %v2382 = vld [vmem:[#allocation8 + $0x1d0] sm:$0xff]
    %v2383 = vld [vmem:[#allocation8 + $0x1d8] sm:$0xff]
    %v2384 = vld [vmem:[#allocation8 + $0x1e0] sm:$0xff]
    %v2385 = vld [vmem:[#allocation8 + $0x1e8] sm:$0xff]
    %v2386 = vld [vmem:[#allocation8 + $0x1f0] sm:$0xff]
    %v2387 = vld [vmem:[#allocation8 + $0x1f8] sm:$0xff]
    %v2388 = vld [vmem:[#allocation10] sm:$0x3]
    %v2390 = vlaneseq
    %v2391 = vshrl.u32 %v2390, 7
    %v2392 = vsub.s32 0, %v2391
    %v2393 = vrot.slane %v2388, %v2392
    %v2394 = vlaneseq
    %v2395 = vshrl.u32 %v2394, 7
    %v2396 = vsub.s32 1, %v2395
    %v2397 = vrot.slane %v2388, %v2396
    %v2464 = vunpack.c.l.b16 %v2324
    %v2465 = vunpack.c.h.b16 %v2324
    %v2466 = vunpack.c.l.b16 %v2325
    %v2467 = vunpack.c.h.b16 %v2325
    %v2468 = vunpack.c.l.b16 %v2326
    %v2469 = vunpack.c.h.b16 %v2326
    %v2470 = vunpack.c.l.b16 %v2327
    %v2471 = vunpack.c.h.b16 %v2327
    %v2472 = vunpack.c.l.b16 %v2328
    %v2473 = vunpack.c.h.b16 %v2328
    %v2474 = vunpack.c.l.b16 %v2329
    %v2475 = vunpack.c.h.b16 %v2329
    %v2476 = vunpack.c.l.b16 %v2330
    %v2477 = vunpack.c.h.b16 %v2330
    %v2478 = vunpack.c.l.b16 %v2331
    %v2479 = vunpack.c.h.b16 %v2331
    %v2480 = vunpack.c.l.b16 %v2332
    %v2481 = vunpack.c.h.b16 %v2332
    %v2482 = vunpack.c.l.b16 %v2333
    %v2483 = vunpack.c.h.b16 %v2333
    %v2484 = vunpack.c.l.b16 %v2334
    %v2485 = vunpack.c.h.b16 %v2334
    %v2486 = vunpack.c.l.b16 %v2335
    %v2487 = vunpack.c.h.b16 %v2335
    %v2488 = vunpack.c.l.b16 %v2336
    %v2489 = vunpack.c.h.b16 %v2336
    %v2490 = vunpack.c.l.b16 %v2337
    %v2491 = vunpack.c.h.b16 %v2337
    %v2492 = vunpack.c.l.b16 %v2338
    %v2493 = vunpack.c.h.b16 %v2338
    %v2494 = vunpack.c.l.b16 %v2339
    %v2495 = vunpack.c.h.b16 %v2339
    %v2496 = vunpack.c.l.b16 %v2340
    %v2497 = vunpack.c.h.b16 %v2340
    %v2498 = vunpack.c.l.b16 %v2341
    %v2499 = vunpack.c.h.b16 %v2341
    %v2500 = vunpack.c.l.b16 %v2342
    %v2501 = vunpack.c.h.b16 %v2342
    %v2502 = vunpack.c.l.b16 %v2343
    %v2503 = vunpack.c.h.b16 %v2343
    %v2504 = vunpack.c.l.b16 %v2344
    %v2505 = vunpack.c.h.b16 %v2344
    %v2506 = vunpack.c.l.b16 %v2345
    %v2507 = vunpack.c.h.b16 %v2345
    %v2508 = vunpack.c.l.b16 %v2346
    %v2509 = vunpack.c.h.b16 %v2346
    %v2510 = vunpack.c.l.b16 %v2347
    %v2511 = vunpack.c.h.b16 %v2347
    %v2512 = vunpack.c.l.b16 %v2348
    %v2513 = vunpack.c.h.b16 %v2348
    %v2514 = vunpack.c.l.b16 %v2349
    %v2515 = vunpack.c.h.b16 %v2349
    %v2516 = vunpack.c.l.b16 %v2350
    %v2517 = vunpack.c.h.b16 %v2350
    %v2518 = vunpack.c.l.b16 %v2351
    %v2519 = vunpack.c.h.b16 %v2351
    %v2520 = vunpack.c.l.b16 %v2352
    %v2521 = vunpack.c.h.b16 %v2352
    %v2522 = vunpack.c.l.b16 %v2353
    %v2523 = vunpack.c.h.b16 %v2353
    %v2524 = vunpack.c.l.b16 %v2354
    %v2525 = vunpack.c.h.b16 %v2354
    %v2526 = vunpack.c.l.b16 %v2355
    %v2527 = vunpack.c.h.b16 %v2355
    %v2528 = vunpack.c.l.b16 %v2356
    %v2529 = vunpack.c.h.b16 %v2356
    %v2530 = vunpack.c.l.b16 %v2357
    %v2531 = vunpack.c.h.b16 %v2357
    %v2532 = vunpack.c.l.b16 %v2358
    %v2533 = vunpack.c.h.b16 %v2358
    %v2534 = vunpack.c.l.b16 %v2359
    %v2535 = vunpack.c.h.b16 %v2359
    %v2536 = vunpack.c.l.b16 %v2360
    %v2537 = vunpack.c.h.b16 %v2360
    %v2538 = vunpack.c.l.b16 %v2361
    %v2539 = vunpack.c.h.b16 %v2361
    %v2540 = vunpack.c.l.b16 %v2362
    %v2541 = vunpack.c.h.b16 %v2362
    %v2542 = vunpack.c.l.b16 %v2363
    %v2543 = vunpack.c.h.b16 %v2363
    %v2544 = vunpack.c.l.b16 %v2364
    %v2545 = vunpack.c.h.b16 %v2364
    %v2546 = vunpack.c.l.b16 %v2365
    %v2547 = vunpack.c.h.b16 %v2365
    %v2548 = vunpack.c.l.b16 %v2366
    %v2549 = vunpack.c.h.b16 %v2366
    %v2550 = vunpack.c.l.b16 %v2367
    %v2551 = vunpack.c.h.b16 %v2367
    %v2552 = vunpack.c.l.b16 %v2368
    %v2553 = vunpack.c.h.b16 %v2368
    %v2554 = vunpack.c.l.b16 %v2369
    %v2555 = vunpack.c.h.b16 %v2369
    %v2556 = vunpack.c.l.b16 %v2370
    %v2557 = vunpack.c.h.b16 %v2370
    %v2558 = vunpack.c.l.b16 %v2371
    %v2559 = vunpack.c.h.b16 %v2371
    %v2560 = vunpack.c.l.b16 %v2372
    %v2561 = vunpack.c.h.b16 %v2372
    %v2562 = vunpack.c.l.b16 %v2373
    %v2563 = vunpack.c.h.b16 %v2373
    %v2564 = vunpack.c.l.b16 %v2374
    %v2565 = vunpack.c.h.b16 %v2374
    %v2566 = vunpack.c.l.b16 %v2375
    %v2567 = vunpack.c.h.b16 %v2375
    %v2568 = vunpack.c.l.b16 %v2376
    %v2569 = vunpack.c.h.b16 %v2376
    %v2570 = vunpack.c.l.b16 %v2377
    %v2571 = vunpack.c.h.b16 %v2377
    %v2572 = vunpack.c.l.b16 %v2378
    %v2573 = vunpack.c.h.b16 %v2378
    %v2574 = vunpack.c.l.b16 %v2379
    %v2575 = vunpack.c.h.b16 %v2379
    %v2576 = vunpack.c.l.b16 %v2380
    %v2577 = vunpack.c.h.b16 %v2380
    %v2578 = vunpack.c.l.b16 %v2381
    %v2579 = vunpack.c.h.b16 %v2381
    %v2580 = vunpack.c.l.b16 %v2382
    %v2581 = vunpack.c.h.b16 %v2382
    %v2582 = vunpack.c.l.b16 %v2383
    %v2583 = vunpack.c.h.b16 %v2383
    %v2584 = vunpack.c.l.b16 %v2384
    %v2585 = vunpack.c.h.b16 %v2384
    %v2586 = vunpack.c.l.b16 %v2385
    %v2587 = vunpack.c.h.b16 %v2385
    %v2588 = vunpack.c.l.b16 %v2386
    %v2589 = vunpack.c.h.b16 %v2386
    %v2590 = vunpack.c.l.b16 %v2387
    %v2591 = vunpack.c.h.b16 %v2387
    %v2592 = vpack.c.b16 %v2466, %v2464
    %v2593 = vpack.c.b16 %v2467, %v2465
    %v2594 = vpack.c.b16 %v2470, %v2468
    %v2595 = vpack.c.b16 %v2471, %v2469
    %v2596 = vpack.c.b16 %v2474, %v2472
    %v2597 = vpack.c.b16 %v2475, %v2473
    %v2598 = vpack.c.b16 %v2478, %v2476
    %v2599 = vpack.c.b16 %v2479, %v2477
    %v2600 = vpack.c.b16 %v2482, %v2480
    %v2601 = vpack.c.b16 %v2483, %v2481
    %v2602 = vpack.c.b16 %v2486, %v2484
    %v2603 = vpack.c.b16 %v2487, %v2485
    %v2604 = vpack.c.b16 %v2490, %v2488
    %v2605 = vpack.c.b16 %v2491, %v2489
    %v2606 = vpack.c.b16 %v2494, %v2492
    %v2607 = vpack.c.b16 %v2495, %v2493
    %v2608 = vpack.c.b16 %v2498, %v2496
    %v2609 = vpack.c.b16 %v2499, %v2497
    %v2610 = vpack.c.b16 %v2502, %v2500
    %v2611 = vpack.c.b16 %v2503, %v2501
    %v2612 = vpack.c.b16 %v2506, %v2504
    %v2613 = vpack.c.b16 %v2507, %v2505
    %v2614 = vpack.c.b16 %v2510, %v2508
    %v2615 = vpack.c.b16 %v2511, %v2509
    %v2616 = vpack.c.b16 %v2514, %v2512
    %v2617 = vpack.c.b16 %v2515, %v2513
    %v2618 = vpack.c.b16 %v2518, %v2516
    %v2619 = vpack.c.b16 %v2519, %v2517
    %v2620 = vpack.c.b16 %v2522, %v2520
    %v2621 = vpack.c.b16 %v2523, %v2521
    %v2622 = vpack.c.b16 %v2526, %v2524
    %v2623 = vpack.c.b16 %v2527, %v2525
    %v2624 = vpack.c.b16 %v2530, %v2528
    %v2625 = vpack.c.b16 %v2531, %v2529
    %v2626 = vpack.c.b16 %v2534, %v2532
    %v2627 = vpack.c.b16 %v2535, %v2533
    %v2628 = vpack.c.b16 %v2538, %v2536
    %v2629 = vpack.c.b16 %v2539, %v2537
    %v2630 = vpack.c.b16 %v2542, %v2540
    %v2631 = vpack.c.b16 %v2543, %v2541
    %v2632 = vpack.c.b16 %v2546, %v2544
    %v2633 = vpack.c.b16 %v2547, %v2545
    %v2634 = vpack.c.b16 %v2550, %v2548
    %v2635 = vpack.c.b16 %v2551, %v2549
    %v2636 = vpack.c.b16 %v2554, %v2552
    %v2637 = vpack.c.b16 %v2555, %v2553
    %v2638 = vpack.c.b16 %v2558, %v2556
    %v2639 = vpack.c.b16 %v2559, %v2557
    %v2640 = vpack.c.b16 %v2562, %v2560
    %v2641 = vpack.c.b16 %v2563, %v2561
    %v2642 = vpack.c.b16 %v2566, %v2564
    %v2643 = vpack.c.b16 %v2567, %v2565
    %v2644 = vpack.c.b16 %v2570, %v2568
    %v2645 = vpack.c.b16 %v2571, %v2569
    %v2646 = vpack.c.b16 %v2574, %v2572
    %v2647 = vpack.c.b16 %v2575, %v2573
    %v2648 = vpack.c.b16 %v2578, %v2576
    %v2649 = vpack.c.b16 %v2579, %v2577
    %v2650 = vpack.c.b16 %v2582, %v2580
    %v2651 = vpack.c.b16 %v2583, %v2581
    %v2652 = vpack.c.b16 %v2586, %v2584
    %v2653 = vpack.c.b16 %v2587, %v2585
    %v2654 = vpack.c.b16 %v2590, %v2588
    %v2655 = vpack.c.b16 %v2591, %v2589
    %2720 = vmatprep.subr.bf16.mxu0 %v2607
    %2721 = vmatpush1.bf16.msra.mxu0 %v2606
    %2722 = vmatprep.subr.bf16.mxu0 %v2605
    %2723 = vmatpush1.bf16.msra.mxu0 %v2604
    %2724 = vmatprep.subr.bf16.mxu0 %v2603
    %2725 = vmatpush1.bf16.msra.mxu0 %v2602
    %2726 = vmatprep.subr.bf16.mxu0 %v2601
    %2727 = vmatpush1.bf16.msra.mxu0 %v2600
    %2728 = vmatprep.subr.bf16.mxu0 %v2599
    %2729 = vmatpush1.bf16.msra.mxu0 %v2598
    %2730 = vmatprep.subr.bf16.mxu0 %v2597
    %2731 = vmatpush1.bf16.msra.mxu0 %v2596
    %2732 = vmatprep.subr.bf16.mxu0 %v2595
    %2733 = vmatpush1.bf16.msra.mxu0 %v2594
    %2734 = vmatprep.subr.bf16.mxu0 %v2593
    %2735 = vmatpush1.bf16.msra.mxu0 %v2592
    %2736 = vmatprep.subr.bf16.mxu0 %v2623
    %2737 = vmatpush2.bf16.msra.mxu0 %v2622
    %2738 = vmatprep.subr.bf16.mxu0 %v2621
    %2739 = vmatpush2.bf16.msra.mxu0 %v2620
    %2740 = vmatprep.subr.bf16.mxu0 %v2619
    %2741 = vmatpush2.bf16.msra.mxu0 %v2618
    %2742 = vmatprep.subr.bf16.mxu0 %v2617
    %2743 = vmatpush2.bf16.msra.mxu0 %v2616
    %2744 = vmatprep.subr.bf16.mxu0 %v2615
    %2745 = vmatpush2.bf16.msra.mxu0 %v2614
    %2746 = vmatprep.subr.bf16.mxu0 %v2613
    %2747 = vmatpush2.bf16.msra.mxu0 %v2612
    %2748 = vmatprep.subr.bf16.mxu0 %v2611
    %2749 = vmatpush2.bf16.msra.mxu0 %v2610
    %2750 = vmatprep.subr.bf16.mxu0 %v2609
    %2751 = vmatpush2.bf16.msra.mxu0 %v2608
    %2752 = vmatprep.mubr.bf16.mxu0 %v2321
    %2753 = vmatmul.mubr.bf16.gmra.mxu0 %v2320
    %v2754 = vpop.f32.mrf.mxu0
    %v2755 = vadd.f32 %v2393, %v2754
    %v2756 = vpop.f32.mrf.mxu0
    %v2757 = vadd.f32 %v2397, %v2756
    %v2758 = vpop.f32.mrf.mxu0
    %v2759 = vpop.f32.mrf.mxu0
    %2760 = vdwg.mxu0
    %2761 = vmatprep.subr.bf16.mxu0 %v2639
    %2762 = vmatpush1.bf16.msra.mxu0 %v2638
    %2763 = vmatprep.subr.bf16.mxu0 %v2637
    %2764 = vmatpush1.bf16.msra.mxu0 %v2636
    %2765 = vmatprep.subr.bf16.mxu0 %v2635
    %2766 = vmatpush1.bf16.msra.mxu0 %v2634
    %2767 = vmatprep.subr.bf16.mxu0 %v2633
    %2768 = vmatpush1.bf16.msra.mxu0 %v2632
    %2769 = vmatprep.subr.bf16.mxu0 %v2631
    %2770 = vmatpush1.bf16.msra.mxu0 %v2630
    %2771 = vmatprep.subr.bf16.mxu0 %v2629
    %2772 = vmatpush1.bf16.msra.mxu0 %v2628
    %2773 = vmatprep.subr.bf16.mxu0 %v2627
    %2774 = vmatpush1.bf16.msra.mxu0 %v2626
    %2775 = vmatprep.subr.bf16.mxu0 %v2625
    %2776 = vmatpush1.bf16.msra.mxu0 %v2624
    %2777 = vmatprep.subr.bf16.mxu0 %v2655
    %2778 = vmatpush2.bf16.msra.mxu0 %v2654
    %2779 = vmatprep.subr.bf16.mxu0 %v2653
    %2780 = vmatpush2.bf16.msra.mxu0 %v2652
    %2781 = vmatprep.subr.bf16.mxu0 %v2651
    %2782 = vmatpush2.bf16.msra.mxu0 %v2650
    %2783 = vmatprep.subr.bf16.mxu0 %v2649
    %2784 = vmatpush2.bf16.msra.mxu0 %v2648
    %2785 = vmatprep.subr.bf16.mxu0 %v2647
    %2786 = vmatpush2.bf16.msra.mxu0 %v2646
    %2787 = vmatprep.subr.bf16.mxu0 %v2645
    %2788 = vmatpush2.bf16.msra.mxu0 %v2644
    %2789 = vmatprep.subr.bf16.mxu0 %v2643
    %2790 = vmatpush2.bf16.msra.mxu0 %v2642
    %2791 = vmatprep.subr.bf16.mxu0 %v2641
    %2792 = vmatpush2.bf16.msra.mxu0 %v2640
    %2793 = vmatprep.mubr.bf16.mxu0 %v2323
    %2794 = vmatmul.mubr.bf16.gmra.mxu0 %v2322
    %v2795 = vpop.f32.mrf.mxu0
    %v2796 = vadd.f32 %v2755, %v2795
    %v2797 = vpop.f32.mrf.mxu0
    %v2798 = vadd.f32 %v2757, %v2797
    %v2799 = vpop.f32.mrf.mxu0
    %v2800 = vpop.f32.mrf.mxu0
    %2801 = vdwg.mxu0
    %v2802 = vmul.f32 %v2796, 0.2
    %v2803 = vmul.f32 %v2798, 0.2
    %v2804 = vmax.f32 %v2796, %v2802
    %v2805 = vmax.f32 %v2798, %v2803
    %v2806 = vpack.c.bf16 %v2804, %v2804
    %v2807 = vpack.c.bf16 %v2805, %v2805
    %v2808 = vld [vmem:[#allocation11] sm:$0xf]
    %v2809 = vld [vmem:[#allocation11 + $0x4] sm:$0xf]
    %v2810 = vld [vmem:[#allocation11 + $0x8] sm:$0xf]
    %v2811 = vld [vmem:[#allocation11 + $0xc] sm:$0xf]
    %v2812 = vld [vmem:[#allocation11 + $0x10] sm:$0xf]
    %v2813 = vld [vmem:[#allocation11 + $0x14] sm:$0xf]
    %v2814 = vld [vmem:[#allocation11 + $0x18] sm:$0xf]
    %v2815 = vld [vmem:[#allocation11 + $0x1c] sm:$0xf]
    %v2816 = vld [vmem:[#allocation11 + $0x20] sm:$0xf]
    %v2817 = vld [vmem:[#allocation11 + $0x24] sm:$0xf]
    %v2818 = vld [vmem:[#allocation11 + $0x28] sm:$0xf]
    %v2819 = vld [vmem:[#allocation11 + $0x2c] sm:$0xf]
    %v2820 = vld [vmem:[#allocation11 + $0x30] sm:$0xf]
    %v2821 = vld [vmem:[#allocation11 + $0x34] sm:$0xf]
    %v2822 = vld [vmem:[#allocation11 + $0x38] sm:$0xf]
    %v2823 = vld [vmem:[#allocation11 + $0x3c] sm:$0xf]
    %v2824 = vld [vmem:[#allocation11 + $0x40] sm:$0xf]
    %v2825 = vld [vmem:[#allocation11 + $0x44] sm:$0xf]
    %v2826 = vld [vmem:[#allocation11 + $0x48] sm:$0xf]
    %v2827 = vld [vmem:[#allocation11 + $0x4c] sm:$0xf]
    %v2828 = vld [vmem:[#allocation11 + $0x50] sm:$0xf]
    %v2829 = vld [vmem:[#allocation11 + $0x54] sm:$0xf]
    %v2830 = vld [vmem:[#allocation11 + $0x58] sm:$0xf]
    %v2831 = vld [vmem:[#allocation11 + $0x5c] sm:$0xf]
    %v2832 = vld [vmem:[#allocation11 + $0x60] sm:$0xf]
    %v2833 = vld [vmem:[#allocation11 + $0x64] sm:$0xf]
    %v2834 = vld [vmem:[#allocation11 + $0x68] sm:$0xf]
    %v2835 = vld [vmem:[#allocation11 + $0x6c] sm:$0xf]
    %v2836 = vld [vmem:[#allocation11 + $0x70] sm:$0xf]
    %v2837 = vld [vmem:[#allocation11 + $0x74] sm:$0xf]
    %v2838 = vld [vmem:[#allocation11 + $0x78] sm:$0xf]
    %v2839 = vld [vmem:[#allocation11 + $0x7c] sm:$0xf]
    %v2840 = vld [vmem:[#allocation13] sm:$0x1]
    %v2842 = vlaneseq
    %v2843 = vshrl.u32 %v2842, 7
    %v2844 = vsub.s32 0, %v2843
    %v2845 = vrot.slane %v2840, %v2844
    %v2879 = vunpack.c.l.b16 %v2808
    %v2880 = vunpack.c.l.b16 %v2809
    %v2881 = vunpack.c.l.b16 %v2810
    %v2882 = vunpack.c.l.b16 %v2811
    %v2883 = vunpack.c.l.b16 %v2812
    %v2884 = vunpack.c.l.b16 %v2813
    %v2885 = vunpack.c.l.b16 %v2814
    %v2886 = vunpack.c.l.b16 %v2815
    %v2887 = vunpack.c.l.b16 %v2816
    %v2888 = vunpack.c.l.b16 %v2817
    %v2889 = vunpack.c.l.b16 %v2818
    %v2890 = vunpack.c.l.b16 %v2819
    %v2891 = vunpack.c.l.b16 %v2820
    %v2892 = vunpack.c.l.b16 %v2821
    %v2893 = vunpack.c.l.b16 %v2822
    %v2894 = vunpack.c.l.b16 %v2823
    %v2895 = vunpack.c.l.b16 %v2824
    %v2896 = vunpack.c.l.b16 %v2825
    %v2897 = vunpack.c.l.b16 %v2826
    %v2898 = vunpack.c.l.b16 %v2827
    %v2899 = vunpack.c.l.b16 %v2828
    %v2900 = vunpack.c.l.b16 %v2829
    %v2901 = vunpack.c.l.b16 %v2830
    %v2902 = vunpack.c.l.b16 %v2831
    %v2903 = vunpack.c.l.b16 %v2832
    %v2904 = vunpack.c.l.b16 %v2833
    %v2905 = vunpack.c.l.b16 %v2834
    %v2906 = vunpack.c.l.b16 %v2835
    %v2907 = vunpack.c.l.b16 %v2836
    %v2908 = vunpack.c.l.b16 %v2837
    %v2909 = vunpack.c.l.b16 %v2838
    %v2910 = vunpack.c.l.b16 %v2839
    %v2911 = vpack.c.b16 %v2880, %v2879
    %v2912 = vpack.c.b16 %v2882, %v2881
    %v2913 = vpack.c.b16 %v2884, %v2883
    %v2914 = vpack.c.b16 %v2886, %v2885
    %v2915 = vpack.c.b16 %v2888, %v2887
    %v2916 = vpack.c.b16 %v2890, %v2889
    %v2917 = vpack.c.b16 %v2892, %v2891
    %v2918 = vpack.c.b16 %v2894, %v2893
    %v2919 = vpack.c.b16 %v2896, %v2895
    %v2920 = vpack.c.b16 %v2898, %v2897
    %v2921 = vpack.c.b16 %v2900, %v2899
    %v2922 = vpack.c.b16 %v2902, %v2901
    %v2923 = vpack.c.b16 %v2904, %v2903
    %v2924 = vpack.c.b16 %v2906, %v2905
    %v2925 = vpack.c.b16 %v2908, %v2907
    %v2926 = vpack.c.b16 %v2910, %v2909
    %2943 = vmatprep.subr.bf16.mxu0 0
    %2944 = vmatpush1.bf16.msra.mxu0 %v2918
    %2945 = vmatprep.subr.bf16.mxu0 0
    %2946 = vmatpush1.bf16.msra.mxu0 %v2917
    %2947 = vmatprep.subr.bf16.mxu0 0
    %2948 = vmatpush1.bf16.msra.mxu0 %v2916
    %2949 = vmatprep.subr.bf16.mxu0 0
    %2950 = vmatpush1.bf16.msra.mxu0 %v2915
    %2951 = vmatprep.subr.bf16.mxu0 0
    %2952 = vmatpush1.bf16.msra.mxu0 %v2914
    %2953 = vmatprep.subr.bf16.mxu0 0
    %2954 = vmatpush1.bf16.msra.mxu0 %v2913
    %2955 = vmatprep.subr.bf16.mxu0 0
    %2956 = vmatpush1.bf16.msra.mxu0 %v2912
    %2957 = vmatprep.subr.bf16.mxu0 0
    %2958 = vmatpush1.bf16.msra.mxu0 %v2911
    %2959 = vmatprep.subr.bf16.mxu0 0
    %2960 = vmatpush2.bf16.msra.mxu0 %v2926
    %2961 = vmatprep.subr.bf16.mxu0 0
    %2962 = vmatpush2.bf16.msra.mxu0 %v2925
    %2963 = vmatprep.subr.bf16.mxu0 0
    %2964 = vmatpush2.bf16.msra.mxu0 %v2924
    %2965 = vmatprep.subr.bf16.mxu0 0
    %2966 = vmatpush2.bf16.msra.mxu0 %v2923
    %2967 = vmatprep.subr.bf16.mxu0 0
    %2968 = vmatpush2.bf16.msra.mxu0 %v2922
    %2969 = vmatprep.subr.bf16.mxu0 0
    %2970 = vmatpush2.bf16.msra.mxu0 %v2921
    %2971 = vmatprep.subr.bf16.mxu0 0
    %2972 = vmatpush2.bf16.msra.mxu0 %v2920
    %2973 = vmatprep.subr.bf16.mxu0 0
    %2974 = vmatpush2.bf16.msra.mxu0 %v2919
    %2975 = vmatprep.mubr.bf16.mxu0 %v2807
    %2976 = vmatmul.mubr.bf16.gmra.mxu0 %v2806
    %v2977 = vpop.f32.mrf.mxu0
    %v2978 = vadd.f32 %v2845, %v2977
    %v2979 = vpop.f32.mrf.mxu0
    %v2980 = vpop.f32.mrf.mxu0
    %v2981 = vpop.f32.mrf.mxu0
    %2982 = vdwg.mxu0
    %2983 = vst [vmem:[#allocation14] sm:$0xff] %v2978
    // Predicated region
    $region58: #{tpu_custom_call.1} parent=1 // pred_check
      _
    $region59: #{tpu_custom_call.1} parent=1 // pred_check_branch
      %2985 = sbr.rel (0) target = $region61
    $region60: #{tpu_custom_call.1} parent=1 // pred_region
      %s2987 = ssub.s32 128, 128
      %2988 = vsyncadd [#allocation4], %s2987
      %s2990 = sshll.u32 [#allocation14], 4
      %s2991 = int_to_ptr.vmem [resolvable:$true] %s2990
      %2993 = dma.vmem_to_hbm [thread:$0]  %s2991, 128, %s7, [#allocation4]
    $region61: #{tpu_custom_call.1} parent=1 // pred_fallthru
      _
    // Predicated region
    $region62: #{tpu_custom_call.1} parent=1 // pred_check
      _
    $region63: #{tpu_custom_call.1} parent=1 // pred_check_branch
      %2995 = sbr.rel (0) target = $region65
    $region64: #{tpu_custom_call.1} parent=1 // pred_region
      %2996 = dma.done [#allocation4], 128
    $region65: #{tpu_custom_call.1} parent=1 // pred_fallthru
      _
    %2997 = vsyncpa [#allocation3], 1
    %2998 = vsyncpa [#allocation6], 1
    %2999 = vsyncpa [#allocation9], 1
    %3000 = vsyncpa [#allocation12], 1
    %3001 = vsyncpa [#allocation4], 1

</llo_original>
